<compile_context>
chip_gen: v7x
topology: tpu7x:2x2x1
jax: 0.10.0
libtpu: 0.0.40
codegen_flags: <defaults>
</compile_context>

<pallas_src>
import math

import jax
import jax.numpy as jnp
from jax import lax
from jax.experimental import pallas as pl
from jax.experimental.pallas import tpu as pltpu

# ----- small config consistent with a BitNet-b1.58 decoder layer -----
BATCH = 2
SEQ = 8
HIDDEN = 128
NUM_HEADS = 4
HEAD_DIM = HIDDEN // NUM_HEADS      # 32
INTERMEDIATE = 256
RMS_EPS = 1e-6
ROPE_THETA = 10000.0

WEIGHT_NAMES = ("qw", "kw", "vw", "ow", "gw", "uw", "dw")


# ---------------- shared math --------------------------------------------
def _rms_norm(x, w, eps):
    var = jnp.mean(x * x, axis=-1, keepdims=True)
    return (x * lax.rsqrt(var + eps)) * w


# ---------------- Pallas kernel -------------------------------------------
def bitnet_layer_kernel(hs_ref, mask_ref, cos_ref, sin_ref,
                        ln1_ref, ln2_ref, wscale_ref,
                        qw_ref, kw_ref, vw_ref, ow_ref,
                        gw_ref, uw_ref, dw_ref,
                        out_ref):
    x = hs_ref[0]                                   # (SEQ, HIDDEN) f32
    mask = mask_ref[...]                            # (SEQ, SEQ)    f32
    cos = cos_ref[...]                              # (SEQ, HEAD_DIM) f32
    sin = sin_ref[...]
    wscales = wscale_ref[...]                       # (7, 1) f32 absmean scales

    def act_quant(h):
        # BitNet b1.58 per-token absmax 8-bit activation quantization.
        absmax = jnp.maximum(jnp.max(jnp.abs(h), axis=-1, keepdims=True), 1e-5)
        s = 127.0 / absmax
        hq = jnp.clip(jnp.round(h * s), -128.0, 127.0).astype(jnp.bfloat16)
        inv_s = absmax * (1.0 / 127.0)              # dequant factor = 1/s
        return hq, inv_s

    def bitdot(hq, inv_s, w_ref, idx):
        # integer-valued bf16 activations x ternary bf16 weights -> exact f32
        # accumulation on the MXU; f32 scales applied afterwards.
        y = jnp.dot(hq, w_ref[...], preferred_element_type=jnp.float32)
        return y * (inv_s * wscales[idx:idx + 1, :])

    def to_heads(t):                                # (S, HIDDEN) -> (H, S, D)
        return jnp.stack(
            [t[:, hd * HEAD_DIM:(hd + 1) * HEAD_DIM] for hd in range(NUM_HEADS)],
            axis=0)

    def rotate_half(xh):                            # (H, S, D) -> (H, S, D)
        half = HEAD_DIM // 2
        return jnp.concatenate([-xh[..., half:], xh[..., :half]], axis=-1)

    # ---- self-attention block ------------------------------------------
    residual = x
    h = _rms_norm(x, ln1_ref[...], RMS_EPS)
    hq, inv_s = act_quant(h)                        # shared by q / k / v
    q = to_heads(bitdot(hq, inv_s, qw_ref, 0))
    k = to_heads(bitdot(hq, inv_s, kw_ref, 1))
    v = to_heads(bitdot(hq, inv_s, vw_ref, 2))

    cosb, sinb = cos[None, :, :], sin[None, :, :]
    q = q * cosb + rotate_half(q) * sinb
    k = k * cosb + rotate_half(k) * sinb

    scale = 1.0 / math.sqrt(HEAD_DIM)
    scores = jnp.einsum("hqd,hkd->hqk",
                        q.astype(jnp.bfloat16), k.astype(jnp.bfloat16),
                        preferred_element_type=jnp.float32) * scale
    scores = scores + mask[None, :, :]
    scores = scores - jnp.max(scores, axis=-1, keepdims=True)
    p = jnp.exp(scores)
    p = p * pl.reciprocal(jnp.sum(p, axis=-1, keepdims=True), approx=True)
    ctx = jnp.einsum("hqk,hkd->hqd",
                     p.astype(jnp.bfloat16), v.astype(jnp.bfloat16),
                     preferred_element_type=jnp.float32)    # (H, S, D)
    attn = jnp.concatenate([ctx[hd] for hd in range(NUM_HEADS)], axis=-1)

    aq, a_inv_s = act_quant(attn)
    attn = bitdot(aq, a_inv_s, ow_ref, 3)
    x = residual + attn

    # ---- MLP (SwiGLU with BitLinear projections) -------------------------
    residual = x
    h = _rms_norm(x, ln2_ref[...], RMS_EPS)
    hq, inv_s = act_quant(h)                        # shared by gate / up
    g = bitdot(hq, inv_s, gw_ref, 4)
    u = bitdot(hq, inv_s, uw_ref, 5)
    m = g * jax.nn.sigmoid(g) * u                   # SiLU(gate) * up
    mq, m_inv_s = act_quant(m)
    out_ref[0] = residual + bitdot(mq, m_inv_s, dw_ref, 6)


def bitnet_layer(hidden_states, params, cos, sin, mask):
    B, S, H = hidden_states.shape

    w_bf16 = [params["wq"][name].astype(jnp.bfloat16) for name in WEIGHT_NAMES]
    w_scales = params["w_scales"].reshape(len(WEIGHT_NAMES), 1).astype(jnp.float32)

    def full(shape):
        n = len(shape)
        return pl.BlockSpec(shape, lambda b, n=n: (0,) * n)

    in_specs = [
        pl.BlockSpec((1, S, H), lambda b: (b, 0, 0)),     # hidden_states
        full(mask.shape),
        full(cos.shape), full(sin.shape),
        full(params["ln1"].shape), full(params["ln2"].shape),
        full(w_scales.shape),
    ] + [full(tuple(w.shape)) for w in w_bf16]

    return pl.pallas_call(
        bitnet_layer_kernel,
        out_shape=jax.ShapeDtypeStruct((B, S, H), jnp.float32),
        grid_spec=pltpu.PrefetchScalarGridSpec(
            num_scalar_prefetch=0,
            grid=(B,),
            in_specs=in_specs,
            out_specs=pl.BlockSpec((1, S, H), lambda b: (b, 0, 0)),
        ),
        compiler_params=pltpu.CompilerParams(
            dimension_semantics=("parallel",)),
    )(hidden_states, mask, cos, sin,
      params["ln1"], params["ln2"], w_scales, *w_bf16)


# ---------------- parameter / table setup (plain-JAX glue) -----------------
def make_params(key):
    dims = {
        "qw": (HIDDEN, HIDDEN), "kw": (HIDDEN, HIDDEN),
        "vw": (HIDDEN, HIDDEN), "ow": (HIDDEN, HIDDEN),
        "gw": (HIDDEN, INTERMEDIATE), "uw": (HIDDEN, INTERMEDIATE),
        "dw": (INTERMEDIATE, HIDDEN),
    }
    ks = jax.random.split(key, len(WEIGHT_NAMES))
    wq, scales = {}, []
    for name, k in zip(WEIGHT_NAMES, ks):
        w = 0.02 * jax.random.normal(k, dims[name], jnp.float32)
        # BitNet b1.58 absmean ternary quantization: ternary values + f32 scale.
        scale = jnp.maximum(jnp.mean(jnp.abs(w)), 1e-5)
        wq[name] = jnp.clip(jnp.round(w / scale), -1.0, 1.0)
        scales.append(scale)
    return {
        "ln1": jnp.ones((1, HIDDEN), jnp.float32),
        "ln2": jnp.ones((1, HIDDEN), jnp.float32),
        "wq": wq,
        "w_scales": jnp.stack(scales).astype(jnp.float32),
    }


def rope_tables(seq, dim, theta=ROPE_THETA):
    inv_freq = 1.0 / (theta ** (jnp.arange(0, dim, 2, dtype=jnp.float32) / dim))
    pos = jnp.arange(seq, dtype=jnp.float32)
    freqs = pos[:, None] * inv_freq[None, :]
    emb = jnp.concatenate([freqs, freqs], axis=-1)
    return jnp.cos(emb), jnp.sin(emb)


# ---------------- pure-JAX f32 reference -----------------------------------
def _rotate_half_ref(x):
    half = x.shape[-1] // 2
    return jnp.concatenate([-x[:, half:], x[:, :half]], axis=-1)


def _bitlinear_ref(x, w_eff):
    s = 127.0 / jnp.maximum(jnp.max(jnp.abs(x), axis=-1, keepdims=True), 1e-5)
    xq = jnp.clip(jnp.round(x * s), -128.0, 127.0)
    y = jnp.dot(xq, w_eff, preferred_element_type=jnp.float32,
                precision=lax.Precision.HIGHEST)
    return y / s


def _layer_body_ref(x, mask, cos, sin, ln1, ln2, qw, kw, vw, ow, gw, uw, dw):
    residual = x
    h = _rms_norm(x, ln1, RMS_EPS)
    q = _bitlinear_ref(h, qw)
    k = _bitlinear_ref(h, kw)
    v = _bitlinear_ref(h, vw)
    scale = 1.0 / math.sqrt(HEAD_DIM)
    head_outs = []
    for hd in range(NUM_HEADS):
        lo = hd * HEAD_DIM
        qh = q[:, lo:lo + HEAD_DIM]
        kh = k[:, lo:lo + HEAD_DIM]
        vh = v[:, lo:lo + HEAD_DIM]
        qh = qh * cos + _rotate_half_ref(qh) * sin
        kh = kh * cos + _rotate_half_ref(kh) * sin
        scores = lax.dot_general(qh, kh, (((1,), (1,)), ((), ())),
                                 preferred_element_type=jnp.float32,
                                 precision=lax.Precision.HIGHEST) * scale
        scores = scores + mask
        scores = scores - jnp.max(scores, axis=-1, keepdims=True)
        p = jnp.exp(scores)
        p = p / jnp.sum(p, axis=-1, keepdims=True)
        head_outs.append(jnp.dot(p, vh, preferred_element_type=jnp.float32,
                                 precision=lax.Precision.HIGHEST))
    attn = jnp.concatenate(head_outs, axis=-1)
    attn = _bitlinear_ref(attn, ow)
    x = residual + attn
    residual = x
    h = _rms_norm(x, ln2, RMS_EPS)
    g = _bitlinear_ref(h, gw)
    u = _bitlinear_ref(h, uw)
    m = g * jax.nn.sigmoid(g) * u
    mlp = _bitlinear_ref(m, dw)
    return residual + mlp


def reference_layer(hs, params, cos, sin, mask):
    w_eff = {name: params["wq"][name] * params["w_scales"][i]
             for i, name in enumerate(WEIGHT_NAMES)}
    outs = [
        _layer_body_ref(hs[b], mask, cos, sin,
                        params["ln1"], params["ln2"],
                        w_eff["qw"], w_eff["kw"], w_eff["vw"], w_eff["ow"],
                        w_eff["gw"], w_eff["uw"], w_eff["dw"])
        for b in range(hs.shape[0])
    ]
    return jnp.stack(outs, axis=0)


if __name__ == "__main__":
    key = jax.random.PRNGKey(0)
    k_x, k_p = jax.random.split(key)

    hidden_states = jax.random.normal(k_x, (BATCH, SEQ, HIDDEN), jnp.float32)
    params = make_params(k_p)
    cos, sin = rope_tables(SEQ, HEAD_DIM)
    causal = jnp.tril(jnp.ones((SEQ, SEQ), dtype=bool))
    mask = jnp.where(causal, 0.0, -1e9).astype(jnp.float32)

    out = bitnet_layer(hidden_states, params, cos, sin, mask)
    out = jax.block_until_ready(out)

    ref = jax.block_until_ready(
        reference_layer(hidden_states, params, cos, sin, mask))
    assert out.shape == (BATCH, SEQ, HIDDEN)
    assert jnp.all(jnp.isfinite(out))
    assert jnp.allclose(out, ref, rtol=1e-2, atol=1e-2)

    print("KERNEL_OK")
</pallas_src>

<mosaic_0001>
module attributes {stable_mosaic.version = 11 : i64} {
  func.func @bitnet_layer_kernel(%arg0: i32, %arg1: memref<1x8x128xf32, #tpu.memory_space<vmem>>, %arg2: memref<8x8xf32, #tpu.memory_space<vmem>>, %arg3: memref<8x32xf32, #tpu.memory_space<vmem>>, %arg4: memref<8x32xf32, #tpu.memory_space<vmem>>, %arg5: memref<1x128xf32, #tpu.memory_space<vmem>>, %arg6: memref<1x128xf32, #tpu.memory_space<vmem>>, %arg7: memref<7x1xf32, #tpu.memory_space<vmem>>, %arg8: memref<128x128xbf16, #tpu.memory_space<vmem>>, %arg9: memref<128x128xbf16, #tpu.memory_space<vmem>>, %arg10: memref<128x128xbf16, #tpu.memory_space<vmem>>, %arg11: memref<128x128xbf16, #tpu.memory_space<vmem>>, %arg12: memref<128x256xbf16, #tpu.memory_space<vmem>>, %arg13: memref<128x256xbf16, #tpu.memory_space<vmem>>, %arg14: memref<256x128xbf16, #tpu.memory_space<vmem>>, %arg15: memref<1x8x128xf32, #tpu.memory_space<vmem>>) attributes {dimension_semantics = [#tpu.dimension_semantics<parallel>], iteration_bounds = array<i64: 2>, scalar_prefetch = 0 : i64, scratch_operands = 0 : i64, tpu.core_type = #tpu.core_type<tc>, window_params = [{transform_indices = @transform_0, window_bounds = array<i64: 1, 8, 128>}, {pipeline_mode = #tpu.pipeline_mode<synchronous>, transform_indices = @transform_1, window_bounds = array<i64: 8, 8>}, {pipeline_mode = #tpu.pipeline_mode<synchronous>, transform_indices = @transform_2, window_bounds = array<i64: 8, 32>}, {pipeline_mode = #tpu.pipeline_mode<synchronous>, transform_indices = @transform_3, window_bounds = array<i64: 8, 32>}, {pipeline_mode = #tpu.pipeline_mode<synchronous>, transform_indices = @transform_4, window_bounds = array<i64: 1, 128>}, {pipeline_mode = #tpu.pipeline_mode<synchronous>, transform_indices = @transform_5, window_bounds = array<i64: 1, 128>}, {pipeline_mode = #tpu.pipeline_mode<synchronous>, transform_indices = @transform_6, window_bounds = array<i64: 7, 1>}, {pipeline_mode = #tpu.pipeline_mode<synchronous>, transform_indices = @transform_7, window_bounds = array<i64: 128, 128>}, {pipeline_mode = #tpu.pipeline_mode<synchronous>, transform_indices = @transform_8, window_bounds = array<i64: 128, 128>}, {pipeline_mode = #tpu.pipeline_mode<synchronous>, transform_indices = @transform_9, window_bounds = array<i64: 128, 128>}, {pipeline_mode = #tpu.pipeline_mode<synchronous>, transform_indices = @transform_10, window_bounds = array<i64: 128, 128>}, {pipeline_mode = #tpu.pipeline_mode<synchronous>, transform_indices = @transform_11, window_bounds = array<i64: 128, 256>}, {pipeline_mode = #tpu.pipeline_mode<synchronous>, transform_indices = @transform_12, window_bounds = array<i64: 128, 256>}, {pipeline_mode = #tpu.pipeline_mode<synchronous>, transform_indices = @transform_13, window_bounds = array<i64: 256, 128>}, {transform_indices = @transform_14, window_bounds = array<i64: 1, 8, 128>}]} {
    %c0 = arith.constant 0 : index
    %c0_0 = arith.constant 0 : index
    %c0_1 = arith.constant 0 : index
    %0 = vector.load %arg1[%c0, %c0_0, %c0_1] : memref<1x8x128xf32, #tpu.memory_space<vmem>>, vector<1x8x128xf32>
    %1 = vector.shape_cast %0 : vector<1x8x128xf32> to vector<8x128xf32>
    %c0_2 = arith.constant 0 : index
    %c0_3 = arith.constant 0 : index
    %2 = vector.load %arg2[%c0_2, %c0_3] : memref<8x8xf32, #tpu.memory_space<vmem>>, vector<8x8xf32>
    %c0_4 = arith.constant 0 : index
    %c0_5 = arith.constant 0 : index
    %3 = vector.load %arg3[%c0_4, %c0_5] : memref<8x32xf32, #tpu.memory_space<vmem>>, vector<8x32xf32>
    %c0_6 = arith.constant 0 : index
    %c0_7 = arith.constant 0 : index
    %4 = vector.load %arg4[%c0_6, %c0_7] : memref<8x32xf32, #tpu.memory_space<vmem>>, vector<8x32xf32>
    %c0_8 = arith.constant 0 : index
    %c0_9 = arith.constant 0 : index
    %5 = vector.load %arg7[%c0_8, %c0_9] : memref<7x1xf32, #tpu.memory_space<vmem>>, vector<7x1xf32>
    %c0_10 = arith.constant 0 : index
    %c0_11 = arith.constant 0 : index
    %6 = vector.load %arg5[%c0_10, %c0_11] : memref<1x128xf32, #tpu.memory_space<vmem>>, vector<1x128xf32>
    %7 = arith.mulf %1, %1 : vector<8x128xf32>
    %cst = arith.constant dense<0.000000e+00> : vector<8xf32>
    %8 = vector.multi_reduction <add>, %7, %cst [1] : vector<8x128xf32> to vector<8xf32>
    %9 = vector.shape_cast %8 : vector<8xf32> to vector<8x1xf32>
    %cst_12 = arith.constant 1.280000e+02 : f32
    %10 = vector.broadcast %cst_12 : f32 to vector<8x1xf32>
    %11 = arith.divf %9, %10 : vector<8x1xf32>
    %cst_13 = arith.constant 9.99999997E-7 : f32
    %12 = vector.broadcast %cst_13 : f32 to vector<8x1xf32>
    %13 = arith.addf %11, %12 : vector<8x1xf32>
    %14 = math.rsqrt %13 : vector<8x1xf32>
    %15 = vector.broadcast %14 : vector<8x1xf32> to vector<8x128xf32>
    %16 = arith.mulf %1, %15 : vector<8x128xf32>
    %17 = vector.broadcast %6 : vector<1x128xf32> to vector<8x128xf32>
    %18 = arith.mulf %16, %17 : vector<8x128xf32>
    %19 = math.absf %18 : vector<8x128xf32>
    %cst_14 = arith.constant dense<0xFF800000> : vector<8xf32>
    %20 = vector.multi_reduction <maximumf>, %19, %cst_14 [1] : vector<8x128xf32> to vector<8xf32>
    %21 = vector.shape_cast %20 : vector<8xf32> to vector<8x1xf32>
    %cst_15 = arith.constant 9.99999974E-6 : f32
    %22 = vector.broadcast %cst_15 : f32 to vector<8x1xf32>
    %23 = arith.maximumf %21, %22 : vector<8x1xf32>
    %cst_16 = arith.constant 1.270000e+02 : f32
    %24 = vector.broadcast %cst_16 : f32 to vector<8x1xf32>
    %25 = arith.divf %24, %23 : vector<8x1xf32>
    %26 = vector.broadcast %25 : vector<8x1xf32> to vector<8x128xf32>
    %27 = arith.mulf %18, %26 : vector<8x128xf32>
    %28 = math.roundeven %27 : vector<8x128xf32>
    %cst_17 = arith.constant -1.280000e+02 : f32
    %cst_18 = arith.constant 1.270000e+02 : f32
    %29 = vector.broadcast %cst_17 : f32 to vector<8x128xf32>
    %30 = arith.maximumf %29, %28 : vector<8x128xf32>
    %31 = vector.broadcast %cst_18 : f32 to vector<8x128xf32>
    %32 = arith.minimumf %31, %30 : vector<8x128xf32>
    %33 = arith.truncf %32 : vector<8x128xf32> to vector<8x128xbf16>
    %cst_19 = arith.constant 0.00787401571 : f32
    %34 = vector.broadcast %cst_19 : f32 to vector<8x1xf32>
    %35 = arith.mulf %23, %34 : vector<8x1xf32>
    %c0_20 = arith.constant 0 : index
    %c0_21 = arith.constant 0 : index
    %36 = vector.load %arg8[%c0_20, %c0_21] : memref<128x128xbf16, #tpu.memory_space<vmem>>, vector<128x128xbf16>
    %cst_22 = arith.constant dense<0.000000e+00> : vector<8x128xf32>
    %37 = tpu.matmul %33, %36, %cst_22 {dimension_numbers = #tpu.dot_dimension_numbers<[1], [0], [0], [1], [0, 0, 1, 1], [], []>} : vector<8x128xbf16>, vector<128x128xbf16>, vector<8x128xf32> -> vector<8x128xf32>
    %38 = vector.extract_strided_slice %5 {offsets = [0, 0], sizes = [1, 1], strides = [1, 1]} : vector<7x1xf32> to vector<1x1xf32>
    %39 = vector.broadcast %38 : vector<1x1xf32> to vector<8x1xf32>
    %40 = arith.mulf %35, %39 : vector<8x1xf32>
    %41 = vector.broadcast %40 : vector<8x1xf32> to vector<8x128xf32>
    %42 = arith.mulf %37, %41 : vector<8x128xf32>
    %43 = vector.extract_strided_slice %42 {offsets = [0, 0], sizes = [8, 32], strides = [1, 1]} : vector<8x128xf32> to vector<8x32xf32>
    %44 = vector.extract_strided_slice %42 {offsets = [0, 32], sizes = [8, 32], strides = [1, 1]} : vector<8x128xf32> to vector<8x32xf32>
    %45 = vector.extract_strided_slice %42 {offsets = [0, 64], sizes = [8, 32], strides = [1, 1]} : vector<8x128xf32> to vector<8x32xf32>
    %46 = vector.extract_strided_slice %42 {offsets = [0, 96], sizes = [8, 32], strides = [1, 1]} : vector<8x128xf32> to vector<8x32xf32>
    %47 = vector.shape_cast %43 : vector<8x32xf32> to vector<1x8x32xf32>
    %48 = vector.shape_cast %44 : vector<8x32xf32> to vector<1x8x32xf32>
    %49 = vector.shape_cast %45 : vector<8x32xf32> to vector<1x8x32xf32>
    %50 = vector.shape_cast %46 : vector<8x32xf32> to vector<1x8x32xf32>
    %51 = tpu.concatenate %47, %48, %49, %50 in 0 : vector<1x8x32xf32>, vector<1x8x32xf32>, vector<1x8x32xf32>, vector<1x8x32xf32> -> vector<4x8x32xf32>
    %c0_23 = arith.constant 0 : index
    %c0_24 = arith.constant 0 : index
    %52 = vector.load %arg9[%c0_23, %c0_24] : memref<128x128xbf16, #tpu.memory_space<vmem>>, vector<128x128xbf16>
    %cst_25 = arith.constant dense<0.000000e+00> : vector<8x128xf32>
    %53 = tpu.matmul %33, %52, %cst_25 {dimension_numbers = #tpu.dot_dimension_numbers<[1], [0], [0], [1], [0, 0, 1, 1], [], []>} : vector<8x128xbf16>, vector<128x128xbf16>, vector<8x128xf32> -> vector<8x128xf32>
    %54 = vector.extract_strided_slice %5 {offsets = [1, 0], sizes = [1, 1], strides = [1, 1]} : vector<7x1xf32> to vector<1x1xf32>
    %55 = vector.broadcast %54 : vector<1x1xf32> to vector<8x1xf32>
    %56 = arith.mulf %35, %55 : vector<8x1xf32>
    %57 = vector.broadcast %56 : vector<8x1xf32> to vector<8x128xf32>
    %58 = arith.mulf %53, %57 : vector<8x128xf32>
    %59 = vector.extract_strided_slice %58 {offsets = [0, 0], sizes = [8, 32], strides = [1, 1]} : vector<8x128xf32> to vector<8x32xf32>
    %60 = vector.extract_strided_slice %58 {offsets = [0, 32], sizes = [8, 32], strides = [1, 1]} : vector<8x128xf32> to vector<8x32xf32>
    %61 = vector.extract_strided_slice %58 {offsets = [0, 64], sizes = [8, 32], strides = [1, 1]} : vector<8x128xf32> to vector<8x32xf32>
    %62 = vector.extract_strided_slice %58 {offsets = [0, 96], sizes = [8, 32], strides = [1, 1]} : vector<8x128xf32> to vector<8x32xf32>
    %63 = vector.shape_cast %59 : vector<8x32xf32> to vector<1x8x32xf32>
    %64 = vector.shape_cast %60 : vector<8x32xf32> to vector<1x8x32xf32>
    %65 = vector.shape_cast %61 : vector<8x32xf32> to vector<1x8x32xf32>
    %66 = vector.shape_cast %62 : vector<8x32xf32> to vector<1x8x32xf32>
    %67 = tpu.concatenate %63, %64, %65, %66 in 0 : vector<1x8x32xf32>, vector<1x8x32xf32>, vector<1x8x32xf32>, vector<1x8x32xf32> -> vector<4x8x32xf32>
    %c0_26 = arith.constant 0 : index
    %c0_27 = arith.constant 0 : index
    %68 = vector.load %arg10[%c0_26, %c0_27] : memref<128x128xbf16, #tpu.memory_space<vmem>>, vector<128x128xbf16>
    %cst_28 = arith.constant dense<0.000000e+00> : vector<8x128xf32>
    %69 = tpu.matmul %33, %68, %cst_28 {dimension_numbers = #tpu.dot_dimension_numbers<[1], [0], [0], [1], [0, 0, 1, 1], [], []>} : vector<8x128xbf16>, vector<128x128xbf16>, vector<8x128xf32> -> vector<8x128xf32>
    %70 = vector.extract_strided_slice %5 {offsets = [2, 0], sizes = [1, 1], strides = [1, 1]} : vector<7x1xf32> to vector<1x1xf32>
    %71 = vector.broadcast %70 : vector<1x1xf32> to vector<8x1xf32>
    %72 = arith.mulf %35, %71 : vector<8x1xf32>
    %73 = vector.broadcast %72 : vector<8x1xf32> to vector<8x128xf32>
    %74 = arith.mulf %69, %73 : vector<8x128xf32>
    %75 = vector.extract_strided_slice %74 {offsets = [0, 0], sizes = [8, 32], strides = [1, 1]} : vector<8x128xf32> to vector<8x32xf32>
    %76 = vector.extract_strided_slice %74 {offsets = [0, 32], sizes = [8, 32], strides = [1, 1]} : vector<8x128xf32> to vector<8x32xf32>
    %77 = vector.extract_strided_slice %74 {offsets = [0, 64], sizes = [8, 32], strides = [1, 1]} : vector<8x128xf32> to vector<8x32xf32>
    %78 = vector.extract_strided_slice %74 {offsets = [0, 96], sizes = [8, 32], strides = [1, 1]} : vector<8x128xf32> to vector<8x32xf32>
    %79 = vector.shape_cast %75 : vector<8x32xf32> to vector<1x8x32xf32>
    %80 = vector.shape_cast %76 : vector<8x32xf32> to vector<1x8x32xf32>
    %81 = vector.shape_cast %77 : vector<8x32xf32> to vector<1x8x32xf32>
    %82 = vector.shape_cast %78 : vector<8x32xf32> to vector<1x8x32xf32>
    %83 = tpu.concatenate %79, %80, %81, %82 in 0 : vector<1x8x32xf32>, vector<1x8x32xf32>, vector<1x8x32xf32>, vector<1x8x32xf32> -> vector<4x8x32xf32>
    %84 = vector.shape_cast %3 : vector<8x32xf32> to vector<1x8x32xf32>
    %85 = vector.shape_cast %4 : vector<8x32xf32> to vector<1x8x32xf32>
    %86 = vector.broadcast %84 : vector<1x8x32xf32> to vector<4x8x32xf32>
    %87 = arith.mulf %51, %86 : vector<4x8x32xf32>
    %88 = vector.extract_strided_slice %51 {offsets = [0, 0, 16], sizes = [4, 8, 16], strides = [1, 1, 1]} : vector<4x8x32xf32> to vector<4x8x16xf32>
    %cst_29 = arith.constant 0.000000e+00 : f32
    %89 = vector.broadcast %cst_29 : f32 to vector<4x8x16xf32>
    %90 = arith.subf %89, %88 : vector<4x8x16xf32>
    %91 = vector.extract_strided_slice %51 {offsets = [0, 0, 0], sizes = [4, 8, 16], strides = [1, 1, 1]} : vector<4x8x32xf32> to vector<4x8x16xf32>
    %92 = tpu.concatenate %90, %91 in 2 : vector<4x8x16xf32>, vector<4x8x16xf32> -> vector<4x8x32xf32>
    %93 = vector.broadcast %85 : vector<1x8x32xf32> to vector<4x8x32xf32>
    %94 = arith.mulf %92, %93 : vector<4x8x32xf32>
    %95 = arith.addf %87, %94 : vector<4x8x32xf32>
    %96 = vector.broadcast %84 : vector<1x8x32xf32> to vector<4x8x32xf32>
    %97 = arith.mulf %67, %96 : vector<4x8x32xf32>
    %98 = vector.extract_strided_slice %67 {offsets = [0, 0, 16], sizes = [4, 8, 16], strides = [1, 1, 1]} : vector<4x8x32xf32> to vector<4x8x16xf32>
    %cst_30 = arith.constant 0.000000e+00 : f32
    %99 = vector.broadcast %cst_30 : f32 to vector<4x8x16xf32>
    %100 = arith.subf %99, %98 : vector<4x8x16xf32>
    %101 = vector.extract_strided_slice %67 {offsets = [0, 0, 0], sizes = [4, 8, 16], strides = [1, 1, 1]} : vector<4x8x32xf32> to vector<4x8x16xf32>
    %102 = tpu.concatenate %100, %101 in 2 : vector<4x8x16xf32>, vector<4x8x16xf32> -> vector<4x8x32xf32>
    %103 = vector.broadcast %85 : vector<1x8x32xf32> to vector<4x8x32xf32>
    %104 = arith.mulf %102, %103 : vector<4x8x32xf32>
    %105 = arith.addf %97, %104 : vector<4x8x32xf32>
    %106 = arith.truncf %95 : vector<4x8x32xf32> to vector<4x8x32xbf16>
    %107 = arith.truncf %105 : vector<4x8x32xf32> to vector<4x8x32xbf16>
    "tpu.trace_start"() <{level = 10 : i32, message = "hqd,hkd->hqk"}> : () -> ()
    %cst_31 = arith.constant dense<0.000000e+00> : vector<4x8x8xf32>
    %108 = tpu.matmul %106, %107, %cst_31 {dimension_numbers = #tpu.dot_dimension_numbers<[2], [2], [1], [1], [0, 0, 0, 1, 1, 1], [0], [0]>} : vector<4x8x32xbf16>, vector<4x8x32xbf16>, vector<4x8x8xf32> -> vector<4x8x8xf32>
    "tpu.trace_stop"() : () -> ()
    %cst_32 = arith.constant 0.176776692 : f32
    %109 = vector.broadcast %cst_32 : f32 to vector<4x8x8xf32>
    %110 = arith.mulf %108, %109 : vector<4x8x8xf32>
    %111 = vector.shape_cast %2 : vector<8x8xf32> to vector<1x8x8xf32>
    %112 = vector.broadcast %111 : vector<1x8x8xf32> to vector<4x8x8xf32>
    %113 = arith.addf %110, %112 : vector<4x8x8xf32>
    %cst_33 = arith.constant dense<0xFF800000> : vector<4x8xf32>
    %114 = vector.multi_reduction <maximumf>, %113, %cst_33 [2] : vector<4x8x8xf32> to vector<4x8xf32>
    %115 = vector.shape_cast %114 : vector<4x8xf32> to vector<4x8x1xf32>
    %116 = vector.broadcast %115 : vector<4x8x1xf32> to vector<4x8x8xf32>
    %117 = arith.subf %113, %116 : vector<4x8x8xf32>
    %118 = math.exp %117 : vector<4x8x8xf32>
    %cst_34 = arith.constant dense<0.000000e+00> : vector<4x8xf32>
    %119 = vector.multi_reduction <add>, %118, %cst_34 [2] : vector<4x8x8xf32> to vector<4x8xf32>
    %120 = vector.shape_cast %119 : vector<4x8xf32> to vector<4x8x1xf32>
    %121 = tpu.reciprocal %120 {approx = true} : vector<4x8x1xf32> -> vector<4x8x1xf32>
    %122 = vector.broadcast %121 : vector<4x8x1xf32> to vector<4x8x8xf32>
    %123 = arith.mulf %118, %122 : vector<4x8x8xf32>
    %124 = arith.truncf %123 : vector<4x8x8xf32> to vector<4x8x8xbf16>
    %125 = arith.truncf %83 : vector<4x8x32xf32> to vector<4x8x32xbf16>
    "tpu.trace_start"() <{level = 10 : i32, message = "hqk,hkd->hqd"}> : () -> ()
    %cst_35 = arith.constant dense<0.000000e+00> : vector<4x8x32xf32>
    %126 = tpu.matmul %124, %125, %cst_35 {dimension_numbers = #tpu.dot_dimension_numbers<[2], [1], [1], [2], [0, 0, 0, 1, 1, 2], [0], [0]>} : vector<4x8x8xbf16>, vector<4x8x32xbf16>, vector<4x8x32xf32> -> vector<4x8x32xf32>
    "tpu.trace_stop"() : () -> ()
    %127 = vector.extract_strided_slice %126 {offsets = [0, 0, 0], sizes = [1, 8, 32], strides = [1, 1, 1]} : vector<4x8x32xf32> to vector<1x8x32xf32>
    %128 = vector.shape_cast %127 : vector<1x8x32xf32> to vector<8x32xf32>
    %129 = vector.extract_strided_slice %126 {offsets = [1, 0, 0], sizes = [1, 8, 32], strides = [1, 1, 1]} : vector<4x8x32xf32> to vector<1x8x32xf32>
    %130 = vector.shape_cast %129 : vector<1x8x32xf32> to vector<8x32xf32>
    %131 = vector.extract_strided_slice %126 {offsets = [2, 0, 0], sizes = [1, 8, 32], strides = [1, 1, 1]} : vector<4x8x32xf32> to vector<1x8x32xf32>
    %132 = vector.shape_cast %131 : vector<1x8x32xf32> to vector<8x32xf32>
    %133 = vector.extract_strided_slice %126 {offsets = [3, 0, 0], sizes = [1, 8, 32], strides = [1, 1, 1]} : vector<4x8x32xf32> to vector<1x8x32xf32>
    %134 = vector.shape_cast %133 : vector<1x8x32xf32> to vector<8x32xf32>
    %135 = tpu.concatenate %128, %130, %132, %134 in 1 : vector<8x32xf32>, vector<8x32xf32>, vector<8x32xf32>, vector<8x32xf32> -> vector<8x128xf32>
    %136 = math.absf %135 : vector<8x128xf32>
    %cst_36 = arith.constant dense<0xFF800000> : vector<8xf32>
    %137 = vector.multi_reduction <maximumf>, %136, %cst_36 [1] : vector<8x128xf32> to vector<8xf32>
    %138 = vector.shape_cast %137 : vector<8xf32> to vector<8x1xf32>
    %cst_37 = arith.constant 9.99999974E-6 : f32
    %139 = vector.broadcast %cst_37 : f32 to vector<8x1xf32>
    %140 = arith.maximumf %138, %139 : vector<8x1xf32>
    %cst_38 = arith.constant 1.270000e+02 : f32
    %141 = vector.broadcast %cst_38 : f32 to vector<8x1xf32>
    %142 = arith.divf %141, %140 : vector<8x1xf32>
    %143 = vector.broadcast %142 : vector<8x1xf32> to vector<8x128xf32>
    %144 = arith.mulf %135, %143 : vector<8x128xf32>
    %145 = math.roundeven %144 : vector<8x128xf32>
    %cst_39 = arith.constant -1.280000e+02 : f32
    %cst_40 = arith.constant 1.270000e+02 : f32
    %146 = vector.broadcast %cst_39 : f32 to vector<8x128xf32>
    %147 = arith.maximumf %146, %145 : vector<8x128xf32>
    %148 = vector.broadcast %cst_40 : f32 to vector<8x128xf32>
    %149 = arith.minimumf %148, %147 : vector<8x128xf32>
    %150 = arith.truncf %149 : vector<8x128xf32> to vector<8x128xbf16>
    %cst_41 = arith.constant 0.00787401571 : f32
    %151 = vector.broadcast %cst_41 : f32 to vector<8x1xf32>
    %152 = arith.mulf %140, %151 : vector<8x1xf32>
    %c0_42 = arith.constant 0 : index
    %c0_43 = arith.constant 0 : index
    %153 = vector.load %arg11[%c0_42, %c0_43] : memref<128x128xbf16, #tpu.memory_space<vmem>>, vector<128x128xbf16>
    %cst_44 = arith.constant dense<0.000000e+00> : vector<8x128xf32>
    %154 = tpu.matmul %150, %153, %cst_44 {dimension_numbers = #tpu.dot_dimension_numbers<[1], [0], [0], [1], [0, 0, 1, 1], [], []>} : vector<8x128xbf16>, vector<128x128xbf16>, vector<8x128xf32> -> vector<8x128xf32>
    %155 = vector.extract_strided_slice %5 {offsets = [3, 0], sizes = [1, 1], strides = [1, 1]} : vector<7x1xf32> to vector<1x1xf32>
    %156 = vector.broadcast %155 : vector<1x1xf32> to vector<8x1xf32>
    %157 = arith.mulf %152, %156 : vector<8x1xf32>
    %158 = vector.broadcast %157 : vector<8x1xf32> to vector<8x128xf32>
    %159 = arith.mulf %154, %158 : vector<8x128xf32>
    %160 = arith.addf %1, %159 : vector<8x128xf32>
    %c0_45 = arith.constant 0 : index
    %c0_46 = arith.constant 0 : index
    %161 = vector.load %arg6[%c0_45, %c0_46] : memref<1x128xf32, #tpu.memory_space<vmem>>, vector<1x128xf32>
    %162 = arith.mulf %160, %160 : vector<8x128xf32>
    %cst_47 = arith.constant dense<0.000000e+00> : vector<8xf32>
    %163 = vector.multi_reduction <add>, %162, %cst_47 [1] : vector<8x128xf32> to vector<8xf32>
    %164 = vector.shape_cast %163 : vector<8xf32> to vector<8x1xf32>
    %cst_48 = arith.constant 1.280000e+02 : f32
    %165 = vector.broadcast %cst_48 : f32 to vector<8x1xf32>
    %166 = arith.divf %164, %165 : vector<8x1xf32>
    %cst_49 = arith.constant 9.99999997E-7 : f32
    %167 = vector.broadcast %cst_49 : f32 to vector<8x1xf32>
    %168 = arith.addf %166, %167 : vector<8x1xf32>
    %169 = math.rsqrt %168 : vector<8x1xf32>
    %170 = vector.broadcast %169 : vector<8x1xf32> to vector<8x128xf32>
    %171 = arith.mulf %160, %170 : vector<8x128xf32>
    %172 = vector.broadcast %161 : vector<1x128xf32> to vector<8x128xf32>
    %173 = arith.mulf %171, %172 : vector<8x128xf32>
    %174 = math.absf %173 : vector<8x128xf32>
    %cst_50 = arith.constant dense<0xFF800000> : vector<8xf32>
    %175 = vector.multi_reduction <maximumf>, %174, %cst_50 [1] : vector<8x128xf32> to vector<8xf32>
    %176 = vector.shape_cast %175 : vector<8xf32> to vector<8x1xf32>
    %cst_51 = arith.constant 9.99999974E-6 : f32
    %177 = vector.broadcast %cst_51 : f32 to vector<8x1xf32>
    %178 = arith.maximumf %176, %177 : vector<8x1xf32>
    %cst_52 = arith.constant 1.270000e+02 : f32
    %179 = vector.broadcast %cst_52 : f32 to vector<8x1xf32>
    %180 = arith.divf %179, %178 : vector<8x1xf32>
    %181 = vector.broadcast %180 : vector<8x1xf32> to vector<8x128xf32>
    %182 = arith.mulf %173, %181 : vector<8x128xf32>
    %183 = math.roundeven %182 : vector<8x128xf32>
    %cst_53 = arith.constant -1.280000e+02 : f32
    %cst_54 = arith.constant 1.270000e+02 : f32
    %184 = vector.broadcast %cst_53 : f32 to vector<8x128xf32>
    %185 = arith.maximumf %184, %183 : vector<8x128xf32>
    %186 = vector.broadcast %cst_54 : f32 to vector<8x128xf32>
    %187 = arith.minimumf %186, %185 : vector<8x128xf32>
    %188 = arith.truncf %187 : vector<8x128xf32> to vector<8x128xbf16>
    %cst_55 = arith.constant 0.00787401571 : f32
    %189 = vector.broadcast %cst_55 : f32 to vector<8x1xf32>
    %190 = arith.mulf %178, %189 : vector<8x1xf32>
    %c0_56 = arith.constant 0 : index
    %c0_57 = arith.constant 0 : index
    %191 = vector.load %arg12[%c0_56, %c0_57] : memref<128x256xbf16, #tpu.memory_space<vmem>>, vector<128x256xbf16>
    %cst_58 = arith.constant dense<0.000000e+00> : vector<8x256xf32>
    %192 = tpu.matmul %188, %191, %cst_58 {dimension_numbers = #tpu.dot_dimension_numbers<[1], [0], [0], [1], [0, 0, 1, 1], [], []>} : vector<8x128xbf16>, vector<128x256xbf16>, vector<8x256xf32> -> vector<8x256xf32>
    %193 = vector.extract_strided_slice %5 {offsets = [4, 0], sizes = [1, 1], strides = [1, 1]} : vector<7x1xf32> to vector<1x1xf32>
    %194 = vector.broadcast %193 : vector<1x1xf32> to vector<8x1xf32>
    %195 = arith.mulf %190, %194 : vector<8x1xf32>
    %196 = vector.broadcast %195 : vector<8x1xf32> to vector<8x256xf32>
    %197 = arith.mulf %192, %196 : vector<8x256xf32>
    %c0_59 = arith.constant 0 : index
    %c0_60 = arith.constant 0 : index
    %198 = vector.load %arg13[%c0_59, %c0_60] : memref<128x256xbf16, #tpu.memory_space<vmem>>, vector<128x256xbf16>
    %cst_61 = arith.constant dense<0.000000e+00> : vector<8x256xf32>
    %199 = tpu.matmul %188, %198, %cst_61 {dimension_numbers = #tpu.dot_dimension_numbers<[1], [0], [0], [1], [0, 0, 1, 1], [], []>} : vector<8x128xbf16>, vector<128x256xbf16>, vector<8x256xf32> -> vector<8x256xf32>
    %200 = vector.extract_strided_slice %5 {offsets = [5, 0], sizes = [1, 1], strides = [1, 1]} : vector<7x1xf32> to vector<1x1xf32>
    %201 = vector.broadcast %200 : vector<1x1xf32> to vector<8x1xf32>
    %202 = arith.mulf %190, %201 : vector<8x1xf32>
    %203 = vector.broadcast %202 : vector<8x1xf32> to vector<8x256xf32>
    %204 = arith.mulf %199, %203 : vector<8x256xf32>
    %205 = arith.negf %197 : vector<8x256xf32>
    %206 = math.exp %205 : vector<8x256xf32>
    %cst_62 = arith.constant 1.000000e+00 : f32
    %207 = vector.broadcast %cst_62 : f32 to vector<8x256xf32>
    %208 = arith.addf %207, %206 : vector<8x256xf32>
    %209 = arith.divf %207, %208 : vector<8x256xf32>
    %210 = arith.mulf %197, %209 : vector<8x256xf32>
    %211 = arith.mulf %210, %204 : vector<8x256xf32>
    %212 = math.absf %211 : vector<8x256xf32>
    %cst_63 = arith.constant dense<0xFF800000> : vector<8xf32>
    %213 = vector.multi_reduction <maximumf>, %212, %cst_63 [1] : vector<8x256xf32> to vector<8xf32>
    %214 = vector.shape_cast %213 : vector<8xf32> to vector<8x1xf32>
    %cst_64 = arith.constant 9.99999974E-6 : f32
    %215 = vector.broadcast %cst_64 : f32 to vector<8x1xf32>
    %216 = arith.maximumf %214, %215 : vector<8x1xf32>
    %cst_65 = arith.constant 1.270000e+02 : f32
    %217 = vector.broadcast %cst_65 : f32 to vector<8x1xf32>
    %218 = arith.divf %217, %216 : vector<8x1xf32>
    %219 = vector.broadcast %218 : vector<8x1xf32> to vector<8x256xf32>
    %220 = arith.mulf %211, %219 : vector<8x256xf32>
    %221 = math.roundeven %220 : vector<8x256xf32>
    %cst_66 = arith.constant -1.280000e+02 : f32
    %cst_67 = arith.constant 1.270000e+02 : f32
    %222 = vector.broadcast %cst_66 : f32 to vector<8x256xf32>
    %223 = arith.maximumf %222, %221 : vector<8x256xf32>
    %224 = vector.broadcast %cst_67 : f32 to vector<8x256xf32>
    %225 = arith.minimumf %224, %223 : vector<8x256xf32>
    %226 = arith.truncf %225 : vector<8x256xf32> to vector<8x256xbf16>
    %cst_68 = arith.constant 0.00787401571 : f32
    %227 = vector.broadcast %cst_68 : f32 to vector<8x1xf32>
    %228 = arith.mulf %216, %227 : vector<8x1xf32>
    %c0_69 = arith.constant 0 : index
    %c0_70 = arith.constant 0 : index
    %229 = vector.load %arg14[%c0_69, %c0_70] : memref<256x128xbf16, #tpu.memory_space<vmem>>, vector<256x128xbf16>
    %cst_71 = arith.constant dense<0.000000e+00> : vector<8x128xf32>
    %230 = tpu.matmul %226, %229, %cst_71 {dimension_numbers = #tpu.dot_dimension_numbers<[1], [0], [0], [1], [0, 0, 1, 1], [], []>} : vector<8x256xbf16>, vector<256x128xbf16>, vector<8x128xf32> -> vector<8x128xf32>
    %231 = vector.extract_strided_slice %5 {offsets = [6, 0], sizes = [1, 1], strides = [1, 1]} : vector<7x1xf32> to vector<1x1xf32>
    %232 = vector.broadcast %231 : vector<1x1xf32> to vector<8x1xf32>
    %233 = arith.mulf %228, %232 : vector<8x1xf32>
    %234 = vector.broadcast %233 : vector<8x1xf32> to vector<8x128xf32>
    %235 = arith.mulf %230, %234 : vector<8x128xf32>
    %236 = arith.addf %160, %235 : vector<8x128xf32>
    %c0_72 = arith.constant 0 : index
    %c0_73 = arith.constant 0 : index
    %c0_74 = arith.constant 0 : index
    %237 = vector.load %arg15[%c0_72, %c0_73, %c0_74] : memref<1x8x128xf32, #tpu.memory_space<vmem>>, vector<1x8x128xf32>
    %238 = vector.shape_cast %237 : vector<1x8x128xf32> to vector<8x128xf32>
    %239 = vector.shape_cast %236 : vector<8x128xf32> to vector<1x8x128xf32>
    tpu.vector_store %arg15[%c0_72, %c0_73, %c0_74], %239 {strides = array<i32>} : memref<1x8x128xf32, #tpu.memory_space<vmem>>, vector<1x8x128xf32>,
    return
  }
  func.func @transform_0(%arg0: i32) -> (i32, i32, i32) {
    %c0_i32 = arith.constant 0 : i32
    %c0_i32_0 = arith.constant 0 : i32
    %c0_i32_1 = arith.constant 0 : i32
    return %arg0, %c0_i32, %c0_i32_0 : i32, i32, i32
  }
  func.func @transform_1(%arg0: i32) -> (i32, i32) {
    %c0_i32 = arith.constant 0 : i32
    %c0_i32_0 = arith.constant 0 : i32
    %c0_i32_1 = arith.constant 0 : i32
    return %c0_i32, %c0_i32_0 : i32, i32
  }
  func.func @transform_2(%arg0: i32) -> (i32, i32) {
    %c0_i32 = arith.constant 0 : i32
    %c0_i32_0 = arith.constant 0 : i32
    %c0_i32_1 = arith.constant 0 : i32
    return %c0_i32, %c0_i32_0 : i32, i32
  }
  func.func @transform_3(%arg0: i32) -> (i32, i32) {
    %c0_i32 = arith.constant 0 : i32
    %c0_i32_0 = arith.constant 0 : i32
    %c0_i32_1 = arith.constant 0 : i32
    return %c0_i32, %c0_i32_0 : i32, i32
  }
  func.func @transform_4(%arg0: i32) -> (i32, i32) {
    %c0_i32 = arith.constant 0 : i32
    %c0_i32_0 = arith.constant 0 : i32
    %c0_i32_1 = arith.constant 0 : i32
    return %c0_i32, %c0_i32_0 : i32, i32
  }
  func.func @transform_5(%arg0: i32) -> (i32, i32) {
    %c0_i32 = arith.constant 0 : i32
    %c0_i32_0 = arith.constant 0 : i32
    %c0_i32_1 = arith.constant 0 : i32
    return %c0_i32, %c0_i32_0 : i32, i32
  }
  func.func @transform_6(%arg0: i32) -> (i32, i32) {
    %c0_i32 = arith.constant 0 : i32
    %c0_i32_0 = arith.constant 0 : i32
    %c0_i32_1 = arith.constant 0 : i32
    return %c0_i32, %c0_i32_0 : i32, i32
  }
  func.func @transform_7(%arg0: i32) -> (i32, i32) {
    %c0_i32 = arith.constant 0 : i32
    %c0_i32_0 = arith.constant 0 : i32
    %c0_i32_1 = arith.constant 0 : i32
    return %c0_i32, %c0_i32_0 : i32, i32
  }
  func.func @transform_8(%arg0: i32) -> (i32, i32) {
    %c0_i32 = arith.constant 0 : i32
    %c0_i32_0 = arith.constant 0 : i32
    %c0_i32_1 = arith.constant 0 : i32
    return %c0_i32, %c0_i32_0 : i32, i32
  }
  func.func @transform_9(%arg0: i32) -> (i32, i32) {
    %c0_i32 = arith.constant 0 : i32
    %c0_i32_0 = arith.constant 0 : i32
    %c0_i32_1 = arith.constant 0 : i32
    return %c0_i32, %c0_i32_0 : i32, i32
  }
  func.func @transform_10(%arg0: i32) -> (i32, i32) {
    %c0_i32 = arith.constant 0 : i32
    %c0_i32_0 = arith.constant 0 : i32
    %c0_i32_1 = arith.constant 0 : i32
    return %c0_i32, %c0_i32_0 : i32, i32
  }
  func.func @transform_11(%arg0: i32) -> (i32, i32) {
    %c0_i32 = arith.constant 0 : i32
    %c0_i32_0 = arith.constant 0 : i32
    %c0_i32_1 = arith.constant 0 : i32
    return %c0_i32, %c0_i32_0 : i32, i32
  }
  func.func @transform_12(%arg0: i32) -> (i32, i32) {
    %c0_i32 = arith.constant 0 : i32
    %c0_i32_0 = arith.constant 0 : i32
    %c0_i32_1 = arith.constant 0 : i32
    return %c0_i32, %c0_i32_0 : i32, i32
  }
  func.func @transform_13(%arg0: i32) -> (i32, i32) {
    %c0_i32 = arith.constant 0 : i32
    %c0_i32_0 = arith.constant 0 : i32
    %c0_i32_1 = arith.constant 0 : i32
    return %c0_i32, %c0_i32_0 : i32, i32
  }
  func.func @transform_14(%arg0: i32) -> (i32, i32, i32) {
    %c0_i32 = arith.constant 0 : i32
    %c0_i32_0 = arith.constant 0 : i32
    %c0_i32_1 = arith.constant 0 : i32
    return %arg0, %c0_i32, %c0_i32_0 : i32, i32, i32
  }
}

</mosaic_0001>

<llo_original>
// kernel: tpu_custom_call.1
$region0: #{tpu_custom_call.1}
  #allocation0 [shape = 'u32[]', space=smem, size = 0x4, offset = 0x4, fixed_abs, tag = 'smem constant byte address 0x4 - core index']
  #allocation1 [shape = 'u32[144,128]{1,0:T(1,128)}', space=vmem, size = 0x12000, scoped, tag = 'internal scratch']
  %s0 = inlined_call_operand.hbm [shape: f32[2,8,128], index: 0, kind: input, shape index: {}]
  %s1 = inlined_call_operand.vmem [shape: f32[8,8], index: 1, kind: input, shape index: {}]
  %s2 = inlined_call_operand.vmem [shape: f32[8,32], index: 2, kind: input, shape index: {}]
  %s3 = inlined_call_operand.hbm [shape: f32[8,32], index: 3, kind: input, shape index: {}]
  %s4 = inlined_call_operand.vmem [shape: f32[1,128], index: 4, kind: input, shape index: {}]
  %s5 = inlined_call_operand.vmem [shape: f32[1,128], index: 5, kind: input, shape index: {}]
  %s6 = inlined_call_operand.vmem [shape: f32[7,1], index: 6, kind: input, shape index: {}]
  %s7 = inlined_call_operand.hbm [shape: bf16[128,128], index: 7, kind: input, shape index: {}]
  %s8 = inlined_call_operand.hbm [shape: bf16[128,128], index: 8, kind: input, shape index: {}]
  %s9 = inlined_call_operand.hbm [shape: bf16[128,128], index: 9, kind: input, shape index: {}]
  %s10 = inlined_call_operand.hbm [shape: bf16[128,128], index: 10, kind: input, shape index: {}]
  %s11 = inlined_call_operand.hbm [shape: bf16[128,256], index: 11, kind: input, shape index: {}]
  %s12 = inlined_call_operand.hbm [shape: bf16[128,256], index: 12, kind: input, shape index: {}]
  %s13 = inlined_call_operand.hbm [shape: bf16[256,128], index: 13, kind: input, shape index: {}]
  %s14 = inlined_call_operand.hbm [shape: f32[2,8,128], index: 14, kind: output, shape index: {}]
  %s15 = sld [smem:[#allocation0]]
  $region125: #{tpu_custom_call.1} parent=0
    _
  %s17 = ssub.s32 1, %s15
  %s18 = scalar_select 0, %s17, %s15
  $region1: #{tpu_custom_call.1} parent=0
    #allocation2 [shape = 'u8[8192]{0}', space=vmem, size = 0x2000, scoped, tag = 'input window, operand 0']
    #allocation3 [shape = 's32[2]{0}', space=sflag, size = 0x8, scoped, tag = 'scoped memory for tpu_custom_call.1']
    #allocation4 [shape = 's32[2]{0}', space=sflag, size = 0x8, scoped, tag = 'scoped memory for tpu_custom_call.1']
    #allocation5 [shape = 'u8[4096]{0}', space=vmem, size = 0x1000, scoped, tag = 'input window, operand 3, single buffered']
    #allocation6 [shape = 's32[1]{0}', space=sflag, size = 0x4, scoped, tag = 'scoped memory for tpu_custom_call.1']
    #allocation7 [shape = 'u8[32768]{0}', space=vmem, size = 0x8000, scoped, tag = 'input window, operand 7, single buffered']
    #allocation8 [shape = 'u8[32768]{0}', space=vmem, size = 0x8000, scoped, tag = 'input window, operand 8, single buffered']
    #allocation9 [shape = 's32[1]{0}', space=sflag, size = 0x4, scoped, tag = 'scoped memory for tpu_custom_call.1']
    #allocation10 [shape = 'u8[32768]{0}', space=vmem, size = 0x8000, scoped, tag = 'input window, operand 9, single buffered']
    #allocation11 [shape = 'u8[32768]{0}', space=vmem, size = 0x8000, scoped, tag = 'input window, operand 10, single buffered']
    #allocation12 [shape = 's32[1]{0}', space=sflag, size = 0x4, scoped, tag = 'scoped memory for tpu_custom_call.1']
    #allocation13 [shape = 'u8[65536]{0}', space=vmem, size = 0x10000, scoped, tag = 'input window, operand 11, single buffered']
    #allocation14 [shape = 'u8[65536]{0}', space=vmem, size = 0x10000, scoped, tag = 'input window, operand 12, single buffered']
    #allocation15 [shape = 's32[1]{0}', space=sflag, size = 0x4, scoped, tag = 'scoped memory for tpu_custom_call.1']
    #allocation16 [shape = 'u8[65536]{0}', space=vmem, size = 0x10000, scoped, tag = 'input window, operand 13, single buffered']
    #allocation17 [shape = 'u8[8192]{0}', space=vmem, size = 0x2000, scoped, tag = 'output window, operand 0']
    %19 = vsyncpa [#allocation3], 0
    %s20 = scalar_lea.sflag [#allocation3], 1
    %21 = vsyncpa %s20, 0
    %22 = vsyncpa [#allocation6], 0
    %23 = vsyncpa [#allocation9], 0
    %24 = vsyncpa [#allocation12], 0
    %25 = vsyncpa [#allocation15], 0
    %26 = vsyncpa [#allocation4], 0
    %s27 = scalar_lea.sflag [#allocation4], 1
    %28 = vsyncpa %s27, 0
    loop: start=0, step=1, limit=4
    $region2: #{tpu_custom_call.1} parent=1 // loop_pre_header
      _
    $region3: #{tpu_custom_call.1} parent=1 // loop_header
      %s30 = sphi 0, %s34
      %p31 = scmp.ge.s32.totalorder %s30, 4
      %s40 = sphi 0, %s42
      %s43 = sphi 0, %s40
      %s44 = sphi 0, %s43
      %s60 = sphi 0, %s44
      %s64 = sphi 0, %s64
      %s66 = sphi 0, %s64
      %s67 = sphi 0, %s66
      %s81 = sphi 0, %s67
      %s85 = sphi 0, %s85
      %s87 = sphi 0, %s85
      %s88 = sphi 0, %s87
      %s102 = sphi 0, %s88
      %s106 = sphi 0, %s106
      %s108 = sphi 0, %s106
      %s109 = sphi 0, %s108
      %s123 = sphi 0, %s109
      %s127 = sphi 0, %s127
      %s129 = sphi 0, %s127
      %s130 = sphi 0, %s129
      %s144 = sphi 0, %s130
      %s148 = sphi 0, %s148
      %s150 = sphi 0, %s148
      %s151 = sphi 0, %s150
      %s165 = sphi 0, %s151
      %s169 = sphi 0, %s169
      %s171 = sphi 0, %s169
      %s172 = sphi 0, %s171
      %s186 = sphi 0, %s172
      %s190 = sphi 0, %s190
      %s192 = sphi 0, %s190
      %s193 = sphi 0, %s192
      %s207 = sphi 0, %s193
      %s211 = sphi 0, %s211
      %s213 = sphi 0, %s211
      %s214 = sphi 0, %s213
      %s228 = sphi 0, %s214
      %s232 = sphi 0, %s232
      %s234 = sphi 0, %s232
      %s235 = sphi 0, %s234
      %s249 = sphi 0, %s235
      %s253 = sphi 0, %s253
      %s255 = sphi 0, %s253
      %s256 = sphi 0, %s255
      %s270 = sphi 0, %s256
      %s274 = sphi 0, %s274
      %s276 = sphi 0, %s274
      %s277 = sphi 0, %s276
      %s291 = sphi 0, %s277
      %s295 = sphi 0, %s295
      %s297 = sphi 0, %s295
      %s298 = sphi 0, %s297
      %s312 = sphi 0, %s298
      %s316 = sphi 0, %s316
      %s318 = sphi 0, %s316
      %s319 = sphi 0, %s318
      %s333 = sphi 0, %s319
      %s339 = sphi 0, %s341
      %s342 = sphi 0, %s339
      %s343 = sphi 0, %s342
      %s359 = sphi 0, %s343
    $region4: #{tpu_custom_call.1} parent=1 // loop_header_branch
      %33 = sbr.rel (%p31) target = $region8
    $region5: #{tpu_custom_call.1} parent=1 // loop_body
      %s35 = ssub.s32 %s30, 1
      %s36 = ssub.s32 %s30, 2
      %s37 = sadd.s32 %s30, 1
      %s38 = ssub.s32 %s30, %s37
      %p39 = scmp.eq.s32.totalorder %s38, 0
      %s41 = sadd.s32 %s40, 1
      %s42 = scalar_select %p39, %s40, %s41
      %p45 = pneg %p39
      %p46 = scmp.eq.s32.totalorder %s30, 1
      %p47 = por %p45, %p46
      %p48 = scmp.ne.s32.totalorder %s40, %s43
      %p49 = scmp.eq.s32.totalorder %s30, 0
      %p50 = por %p48, %p49
      %p51 = scmp.ne.s32.totalorder %s40, %s43
      %p52 = scmp.eq.s32.totalorder %s35, 1
      %p53 = por %p51, %p52
      %p54 = scmp.ne.s32.totalorder %s43, %s44
      %p55 = scmp.eq.s32.totalorder %s35, 0
      %p56 = por %p54, %p55
      %p57 = scmp.ne.s32.totalorder %s43, %s44
      %p58 = scmp.eq.s32.totalorder %s36, 1
      %p59 = por %p57, %p58
      %p61 = scmp.ne.s32.totalorder %s44, %s60
      %p62 = scmp.eq.s32.totalorder %s36, 0
      %p63 = por %p61, %p62
      %s65 = sadd.s32 %s64, 1
      %p68 = scmp.eq.s32.totalorder %s30, 1
      %p69 = scmp.ne.s32.totalorder %s64, %s66
      %p70 = scmp.eq.s32.totalorder %s30, 0
      %p71 = por %p69, %p70
      %p72 = scmp.ne.s32.totalorder %s64, %s66
      %p73 = scmp.eq.s32.totalorder %s35, 1
      %p74 = por %p72, %p73
      %p75 = scmp.ne.s32.totalorder %s66, %s67
      %p76 = scmp.eq.s32.totalorder %s35, 0
      %p77 = por %p75, %p76
      %p78 = scmp.ne.s32.totalorder %s66, %s67
      %p79 = scmp.eq.s32.totalorder %s36, 1
      %p80 = por %p78, %p79
      %p82 = scmp.ne.s32.totalorder %s67, %s81
      %p83 = scmp.eq.s32.totalorder %s36, 0
      %p84 = por %p82, %p83
      %s86 = sadd.s32 %s85, 1
      %p89 = scmp.eq.s32.totalorder %s30, 1
      %p90 = scmp.ne.s32.totalorder %s85, %s87
      %p91 = scmp.eq.s32.totalorder %s30, 0
      %p92 = por %p90, %p91
      %p93 = scmp.ne.s32.totalorder %s85, %s87
      %p94 = scmp.eq.s32.totalorder %s35, 1
      %p95 = por %p93, %p94
      %p96 = scmp.ne.s32.totalorder %s87, %s88
      %p97 = scmp.eq.s32.totalorder %s35, 0
      %p98 = por %p96, %p97
      %p99 = scmp.ne.s32.totalorder %s87, %s88
      %p100 = scmp.eq.s32.totalorder %s36, 1
      %p101 = por %p99, %p100
      %p103 = scmp.ne.s32.totalorder %s88, %s102
      %p104 = scmp.eq.s32.totalorder %s36, 0
      %p105 = por %p103, %p104
      %s107 = sadd.s32 %s106, 1
      %p110 = scmp.eq.s32.totalorder %s30, 1
      %p111 = scmp.ne.s32.totalorder %s106, %s108
      %p112 = scmp.eq.s32.totalorder %s30, 0
      %p113 = por %p111, %p112
      %p114 = scmp.ne.s32.totalorder %s106, %s108
      %p115 = scmp.eq.s32.totalorder %s35, 1
      %p116 = por %p114, %p115
      %p117 = scmp.ne.s32.totalorder %s108, %s109
      %p118 = scmp.eq.s32.totalorder %s35, 0
      %p119 = por %p117, %p118
      %p120 = scmp.ne.s32.totalorder %s108, %s109
      %p121 = scmp.eq.s32.totalorder %s36, 1
      %p122 = por %p120, %p121
      %p124 = scmp.ne.s32.totalorder %s109, %s123
      %p125 = scmp.eq.s32.totalorder %s36, 0
      %p126 = por %p124, %p125
      %s128 = sadd.s32 %s127, 1
      %p131 = scmp.eq.s32.totalorder %s30, 1
      %p132 = scmp.ne.s32.totalorder %s127, %s129
      %p133 = scmp.eq.s32.totalorder %s30, 0
      %p134 = por %p132, %p133
      %p135 = scmp.ne.s32.totalorder %s127, %s129
      %p136 = scmp.eq.s32.totalorder %s35, 1
      %p137 = por %p135, %p136
      %p138 = scmp.ne.s32.totalorder %s129, %s130
      %p139 = scmp.eq.s32.totalorder %s35, 0
      %p140 = por %p138, %p139
      %p141 = scmp.ne.s32.totalorder %s129, %s130
      %p142 = scmp.eq.s32.totalorder %s36, 1
      %p143 = por %p141, %p142
      %p145 = scmp.ne.s32.totalorder %s130, %s144
      %p146 = scmp.eq.s32.totalorder %s36, 0
      %p147 = por %p145, %p146
      %s149 = sadd.s32 %s148, 1
      %p152 = scmp.eq.s32.totalorder %s30, 1
      %p153 = scmp.ne.s32.totalorder %s148, %s150
      %p154 = scmp.eq.s32.totalorder %s30, 0
      %p155 = por %p153, %p154
      %p156 = scmp.ne.s32.totalorder %s148, %s150
      %p157 = scmp.eq.s32.totalorder %s35, 1
      %p158 = por %p156, %p157
      %p159 = scmp.ne.s32.totalorder %s150, %s151
      %p160 = scmp.eq.s32.totalorder %s35, 0
      %p161 = por %p159, %p160
      %p162 = scmp.ne.s32.totalorder %s150, %s151
      %p163 = scmp.eq.s32.totalorder %s36, 1
      %p164 = por %p162, %p163
      %p166 = scmp.ne.s32.totalorder %s151, %s165
      %p167 = scmp.eq.s32.totalorder %s36, 0
      %p168 = por %p166, %p167
      %s170 = sadd.s32 %s169, 1
      %p173 = scmp.eq.s32.totalorder %s30, 1
      %p174 = scmp.ne.s32.totalorder %s169, %s171
      %p175 = scmp.eq.s32.totalorder %s30, 0
      %p176 = por %p174, %p175
      %p177 = scmp.ne.s32.totalorder %s169, %s171
      %p178 = scmp.eq.s32.totalorder %s35, 1
      %p179 = por %p177, %p178
      %p180 = scmp.ne.s32.totalorder %s171, %s172
      %p181 = scmp.eq.s32.totalorder %s35, 0
      %p182 = por %p180, %p181
      %p183 = scmp.ne.s32.totalorder %s171, %s172
      %p184 = scmp.eq.s32.totalorder %s36, 1
      %p185 = por %p183, %p184
      %p187 = scmp.ne.s32.totalorder %s172, %s186
      %p188 = scmp.eq.s32.totalorder %s36, 0
      %p189 = por %p187, %p188
      %s191 = sadd.s32 %s190, 1
      %p194 = scmp.eq.s32.totalorder %s30, 1
      %p195 = scmp.ne.s32.totalorder %s190, %s192
      %p196 = scmp.eq.s32.totalorder %s30, 0
      %p197 = por %p195, %p196
      %p198 = scmp.ne.s32.totalorder %s190, %s192
      %p199 = scmp.eq.s32.totalorder %s35, 1
      %p200 = por %p198, %p199
      %p201 = scmp.ne.s32.totalorder %s192, %s193
      %p202 = scmp.eq.s32.totalorder %s35, 0
      %p203 = por %p201, %p202
      %p204 = scmp.ne.s32.totalorder %s192, %s193
      %p205 = scmp.eq.s32.totalorder %s36, 1
      %p206 = por %p204, %p205
      %p208 = scmp.ne.s32.totalorder %s193, %s207
      %p209 = scmp.eq.s32.totalorder %s36, 0
      %p210 = por %p208, %p209
      %s212 = sadd.s32 %s211, 1
      %p215 = scmp.eq.s32.totalorder %s30, 1
      %p216 = scmp.ne.s32.totalorder %s211, %s213
      %p217 = scmp.eq.s32.totalorder %s30, 0
      %p218 = por %p216, %p217
      %p219 = scmp.ne.s32.totalorder %s211, %s213
      %p220 = scmp.eq.s32.totalorder %s35, 1
      %p221 = por %p219, %p220
      %p222 = scmp.ne.s32.totalorder %s213, %s214
      %p223 = scmp.eq.s32.totalorder %s35, 0
      %p224 = por %p222, %p223
      %p225 = scmp.ne.s32.totalorder %s213, %s214
      %p226 = scmp.eq.s32.totalorder %s36, 1
      %p227 = por %p225, %p226
      %p229 = scmp.ne.s32.totalorder %s214, %s228
      %p230 = scmp.eq.s32.totalorder %s36, 0
      %p231 = por %p229, %p230
      %s233 = sadd.s32 %s232, 1
      %p236 = scmp.eq.s32.totalorder %s30, 1
      %p237 = scmp.ne.s32.totalorder %s232, %s234
      %p238 = scmp.eq.s32.totalorder %s30, 0
      %p239 = por %p237, %p238
      %p240 = scmp.ne.s32.totalorder %s232, %s234
      %p241 = scmp.eq.s32.totalorder %s35, 1
      %p242 = por %p240, %p241
      %p243 = scmp.ne.s32.totalorder %s234, %s235
      %p244 = scmp.eq.s32.totalorder %s35, 0
      %p245 = por %p243, %p244
      %p246 = scmp.ne.s32.totalorder %s234, %s235
      %p247 = scmp.eq.s32.totalorder %s36, 1
      %p248 = por %p246, %p247
      %p250 = scmp.ne.s32.totalorder %s235, %s249
      %p251 = scmp.eq.s32.totalorder %s36, 0
      %p252 = por %p250, %p251
      %s254 = sadd.s32 %s253, 1
      %p257 = scmp.eq.s32.totalorder %s30, 1
      %p258 = scmp.ne.s32.totalorder %s253, %s255
      %p259 = scmp.eq.s32.totalorder %s30, 0
      %p260 = por %p258, %p259
      %p261 = scmp.ne.s32.totalorder %s253, %s255
      %p262 = scmp.eq.s32.totalorder %s35, 1
      %p263 = por %p261, %p262
      %p264 = scmp.ne.s32.totalorder %s255, %s256
      %p265 = scmp.eq.s32.totalorder %s35, 0
      %p266 = por %p264, %p265
      %p267 = scmp.ne.s32.totalorder %s255, %s256
      %p268 = scmp.eq.s32.totalorder %s36, 1
      %p269 = por %p267, %p268
      %p271 = scmp.ne.s32.totalorder %s256, %s270
      %p272 = scmp.eq.s32.totalorder %s36, 0
      %p273 = por %p271, %p272
      %s275 = sadd.s32 %s274, 1
      %p278 = scmp.eq.s32.totalorder %s30, 1
      %p279 = scmp.ne.s32.totalorder %s274, %s276
      %p280 = scmp.eq.s32.totalorder %s30, 0
      %p281 = por %p279, %p280
      %p282 = scmp.ne.s32.totalorder %s274, %s276
      %p283 = scmp.eq.s32.totalorder %s35, 1
      %p284 = por %p282, %p283
      %p285 = scmp.ne.s32.totalorder %s276, %s277
      %p286 = scmp.eq.s32.totalorder %s35, 0
      %p287 = por %p285, %p286
      %p288 = scmp.ne.s32.totalorder %s276, %s277
      %p289 = scmp.eq.s32.totalorder %s36, 1
      %p290 = por %p288, %p289
      %p292 = scmp.ne.s32.totalorder %s277, %s291
      %p293 = scmp.eq.s32.totalorder %s36, 0
      %p294 = por %p292, %p293
      %s296 = sadd.s32 %s295, 1
      %p299 = scmp.eq.s32.totalorder %s30, 1
      %p300 = scmp.ne.s32.totalorder %s295, %s297
      %p301 = scmp.eq.s32.totalorder %s30, 0
      %p302 = por %p300, %p301
      %p303 = scmp.ne.s32.totalorder %s295, %s297
      %p304 = scmp.eq.s32.totalorder %s35, 1
      %p305 = por %p303, %p304
      %p306 = scmp.ne.s32.totalorder %s297, %s298
      %p307 = scmp.eq.s32.totalorder %s35, 0
      %p308 = por %p306, %p307
      %p309 = scmp.ne.s32.totalorder %s297, %s298
      %p310 = scmp.eq.s32.totalorder %s36, 1
      %p311 = por %p309, %p310
      %p313 = scmp.ne.s32.totalorder %s298, %s312
      %p314 = scmp.eq.s32.totalorder %s36, 0
      %p315 = por %p313, %p314
      %s317 = sadd.s32 %s316, 1
      %p320 = scmp.eq.s32.totalorder %s30, 1
      %p321 = scmp.ne.s32.totalorder %s316, %s318
      %p322 = scmp.eq.s32.totalorder %s30, 0
      %p323 = por %p321, %p322
      %p324 = scmp.ne.s32.totalorder %s316, %s318
      %p325 = scmp.eq.s32.totalorder %s35, 1
      %p326 = por %p324, %p325
      %p327 = scmp.ne.s32.totalorder %s318, %s319
      %p328 = scmp.eq.s32.totalorder %s35, 0
      %p329 = por %p327, %p328
      %p330 = scmp.ne.s32.totalorder %s318, %s319
      %p331 = scmp.eq.s32.totalorder %s36, 1
      %p332 = por %p330, %p331
      %p334 = scmp.ne.s32.totalorder %s319, %s333
      %p335 = scmp.eq.s32.totalorder %s36, 0
      %p336 = por %p334, %p335
      %s337 = ssub.s32 %s30, %s37
      %p338 = scmp.eq.s32.totalorder %s337, 0
      %s340 = sadd.s32 %s339, 1
      %s341 = scalar_select %p338, %s339, %s340
      %p344 = pneg %p338
      %p345 = scmp.eq.s32.totalorder %s30, 1
      %p346 = por %p344, %p345
      %p347 = scmp.ne.s32.totalorder %s339, %s342
      %p348 = scmp.eq.s32.totalorder %s30, 0
      %p349 = por %p347, %p348
      %p350 = scmp.ne.s32.totalorder %s339, %s342
      %p351 = scmp.eq.s32.totalorder %s35, 1
      %p352 = por %p350, %p351
      %p353 = scmp.ne.s32.totalorder %s342, %s343
      %p354 = scmp.eq.s32.totalorder %s35, 0
      %p355 = por %p353, %p354
      %p356 = scmp.ne.s32.totalorder %s342, %s343
      %p357 = scmp.eq.s32.totalorder %s36, 1
      %p358 = por %p356, %p357
      %p360 = scmp.ne.s32.totalorder %s343, %s359
      %p361 = scmp.eq.s32.totalorder %s36, 0
      %p362 = por %p360, %p361
      %p363 = scmp.le.s32.totalorder 1, %s30
      %p364 = scmp.lt.s32.totalorder %s30, 3
      %p365 = pnand %p363, %p364
      %p366 = pneg %p365
      // Predicated region
      $region9: #{tpu_custom_call.1} parent=5 // pred_check
        _
      $region10: #{tpu_custom_call.1} parent=5 // pred_check_branch
        %368 = sbr.rel (%p365) target = $region12
      $region11: #{tpu_custom_call.1} parent=5 // pred_region
        %s369 = ssub.s32 %s30, 1
        // Predicated region
        $region13: #{tpu_custom_call.1} parent=11 // pred_check
          %p370 = pneg %p77
        $region14: #{tpu_custom_call.1} parent=11 // pred_check_branch
          %372 = sbr.rel (%p370) target = $region16
        $region15: #{tpu_custom_call.1} parent=11 // pred_region
          _
        $region16: #{tpu_custom_call.1} parent=11 // pred_fallthru
          _
        // Predicated region
        $region17: #{tpu_custom_call.1} parent=11 // pred_check
          %p373 = pneg %p98
        $region18: #{tpu_custom_call.1} parent=11 // pred_check_branch
          %375 = sbr.rel (%p373) target = $region20
        $region19: #{tpu_custom_call.1} parent=11 // pred_region
          _
        $region20: #{tpu_custom_call.1} parent=11 // pred_fallthru
          _
        // Predicated region
        $region21: #{tpu_custom_call.1} parent=11 // pred_check
          %p376 = pneg %p119
        $region22: #{tpu_custom_call.1} parent=11 // pred_check_branch
          %378 = sbr.rel (%p376) target = $region24
        $region23: #{tpu_custom_call.1} parent=11 // pred_region
          %s380 = ssub.s32 128, 128
          %381 = vsyncadd [#allocation6], %s380
          %s383 = sshll.u32 [#allocation5], 4
          %s384 = int_to_ptr.vmem [resolvable:$true] %s383
          %386 = dma.hbm_to_vmem [thread:$0]  %s3, 128, %s384, [#allocation6]
        $region24: #{tpu_custom_call.1} parent=11 // pred_fallthru
          _
        // Predicated region
        $region25: #{tpu_custom_call.1} parent=11 // pred_check
          %p387 = pneg %p140
        $region26: #{tpu_custom_call.1} parent=11 // pred_check_branch
          %389 = sbr.rel (%p387) target = $region28
        $region27: #{tpu_custom_call.1} parent=11 // pred_region
          _
        $region28: #{tpu_custom_call.1} parent=11 // pred_fallthru
          _
        // Predicated region
        $region29: #{tpu_custom_call.1} parent=11 // pred_check
          %p390 = pneg %p161
        $region30: #{tpu_custom_call.1} parent=11 // pred_check_branch
          %392 = sbr.rel (%p390) target = $region32
        $region31: #{tpu_custom_call.1} parent=11 // pred_region
          _
        $region32: #{tpu_custom_call.1} parent=11 // pred_fallthru
          _
        // Predicated region
        $region33: #{tpu_custom_call.1} parent=11 // pred_check
          %p393 = pneg %p182
        $region34: #{tpu_custom_call.1} parent=11 // pred_check_branch
          %395 = sbr.rel (%p393) target = $region36
        $region35: #{tpu_custom_call.1} parent=11 // pred_region
          _
        $region36: #{tpu_custom_call.1} parent=11 // pred_fallthru
          _
        // Predicated region
        $region37: #{tpu_custom_call.1} parent=11 // pred_check
          %p396 = pneg %p203
        $region38: #{tpu_custom_call.1} parent=11 // pred_check_branch
          %398 = sbr.rel (%p396) target = $region40
        $region39: #{tpu_custom_call.1} parent=11 // pred_region
          %s400 = ssub.s32 1024, 1024
          %401 = vsyncadd [#allocation6], %s400
          %s402 = sshll.u32 [#allocation7], 4
          %s403 = int_to_ptr.vmem [resolvable:$true] %s402
          %408 = dma.hbm_to_vmem [thread:$0]  %s7, 1024, %s403, [#allocation6], 64, 64, 4
        $region40: #{tpu_custom_call.1} parent=11 // pred_fallthru
          _
        // Predicated region
        $region41: #{tpu_custom_call.1} parent=11 // pred_check
          %p409 = pneg %p224
        $region42: #{tpu_custom_call.1} parent=11 // pred_check_branch
          %411 = sbr.rel (%p409) target = $region44
        $region43: #{tpu_custom_call.1} parent=11 // pred_region
          %s413 = ssub.s32 1024, 1024
          %414 = vsyncadd [#allocation9], %s413
          %s415 = sshll.u32 [#allocation8], 4
          %s416 = int_to_ptr.vmem [resolvable:$true] %s415
          %421 = dma.hbm_to_vmem [thread:$0]  %s8, 1024, %s416, [#allocation9], 64, 64, 4
        $region44: #{tpu_custom_call.1} parent=11 // pred_fallthru
          _
        // Predicated region
        $region45: #{tpu_custom_call.1} parent=11 // pred_check
          %p422 = pneg %p245
        $region46: #{tpu_custom_call.1} parent=11 // pred_check_branch
          %424 = sbr.rel (%p422) target = $region48
        $region47: #{tpu_custom_call.1} parent=11 // pred_region
          %s426 = ssub.s32 1024, 1024
          %427 = vsyncadd [#allocation9], %s426
          %s428 = sshll.u32 [#allocation10], 4
          %s429 = int_to_ptr.vmem [resolvable:$true] %s428
          %434 = dma.hbm_to_vmem [thread:$0]  %s9, 1024, %s429, [#allocation9], 64, 64, 4
        $region48: #{tpu_custom_call.1} parent=11 // pred_fallthru
          _
        // Predicated region
        $region49: #{tpu_custom_call.1} parent=11 // pred_check
          %p435 = pneg %p266
        $region50: #{tpu_custom_call.1} parent=11 // pred_check_branch
          %437 = sbr.rel (%p435) target = $region52
        $region51: #{tpu_custom_call.1} parent=11 // pred_region
          %s439 = ssub.s32 1024, 1024
          %440 = vsyncadd [#allocation12], %s439
          %s441 = sshll.u32 [#allocation11], 4
          %s442 = int_to_ptr.vmem [resolvable:$true] %s441
          %447 = dma.hbm_to_vmem [thread:$0]  %s10, 1024, %s442, [#allocation12], 64, 64, 4
        $region52: #{tpu_custom_call.1} parent=11 // pred_fallthru
          _
        // Predicated region
        $region53: #{tpu_custom_call.1} parent=11 // pred_check
          %p448 = pneg %p287
        $region54: #{tpu_custom_call.1} parent=11 // pred_check_branch
          %450 = sbr.rel (%p448) target = $region56
        $region55: #{tpu_custom_call.1} parent=11 // pred_region
          %s452 = ssub.s32 2048, 2048
          %453 = vsyncadd [#allocation12], %s452
          %s454 = sshll.u32 [#allocation13], 4
          %s455 = int_to_ptr.vmem [resolvable:$true] %s454
          %460 = dma.hbm_to_vmem [thread:$0]  %s11, 2048, %s455, [#allocation12], 128, 128, 8
        $region56: #{tpu_custom_call.1} parent=11 // pred_fallthru
          _
        // Predicated region
        $region57: #{tpu_custom_call.1} parent=11 // pred_check
          %p461 = pneg %p308
        $region58: #{tpu_custom_call.1} parent=11 // pred_check_branch
          %463 = sbr.rel (%p461) target = $region60
        $region59: #{tpu_custom_call.1} parent=11 // pred_region
          %s465 = ssub.s32 2048, 2048
          %466 = vsyncadd [#allocation15], %s465
          %s467 = sshll.u32 [#allocation14], 4
          %s468 = int_to_ptr.vmem [resolvable:$true] %s467
          %473 = dma.hbm_to_vmem [thread:$0]  %s12, 2048, %s468, [#allocation15], 128, 128, 8
        $region60: #{tpu_custom_call.1} parent=11 // pred_fallthru
          _
        // Predicated region
        $region61: #{tpu_custom_call.1} parent=11 // pred_check
          %p474 = pneg %p329
        $region62: #{tpu_custom_call.1} parent=11 // pred_check_branch
          %476 = sbr.rel (%p474) target = $region64
        $region63: #{tpu_custom_call.1} parent=11 // pred_region
          %s478 = ssub.s32 2048, 2048
          %479 = vsyncadd [#allocation15], %s478
          %s480 = sshll.u32 [#allocation16], 4
          %s481 = int_to_ptr.vmem [resolvable:$true] %s480
          %486 = dma.hbm_to_vmem [thread:$0]  %s13, 2048, %s481, [#allocation15], 64, 64, 4
        $region64: #{tpu_custom_call.1} parent=11 // pred_fallthru
          _
      $region12: #{tpu_custom_call.1} parent=5 // pred_fallthru
        _
      %p487 = scmp.lt.s32.totalorder %s30, 2
      // Predicated region
      $region65: #{tpu_custom_call.1} parent=5 // pred_check
        %p488 = pneg %p487
      $region66: #{tpu_custom_call.1} parent=5 // pred_check_branch
        %490 = sbr.rel (%p488) target = $region68
      $region67: #{tpu_custom_call.1} parent=5 // pred_region
        // Predicated region
        $region69: #{tpu_custom_call.1} parent=67 // pred_check
          %p491 = pneg %p50
        $region70: #{tpu_custom_call.1} parent=67 // pred_check_branch
          %493 = sbr.rel (%p491) target = $region72
        $region71: #{tpu_custom_call.1} parent=67 // pred_region
          %s494 = sand.u32 %s40, 1
          %s495 = scalar_lea.sflag [#allocation3], %s494
          %s496 = sand.u32 %s40, 1
          %s497 = smul.addr %s496, 8
          %s498 = scalar_lea.vmem [#allocation2], %s497
          %s500 = ssub.s32 128, 128
          %501 = vsyncadd %s495, %s500
          %s502 = smul.addr %s30, 128
          %s503 = scalar_lea.hbm %s0, %s502
          %s505 = sshll.u32 %s498, 4
          %s506 = int_to_ptr.vmem [resolvable:$true] %s505
          %508 = dma.hbm_to_vmem [thread:$0]  %s503, 128, %s506, %s495
        $region72: #{tpu_custom_call.1} parent=67 // pred_fallthru
          _
      $region68: #{tpu_custom_call.1} parent=5 // pred_fallthru
        _
      %p509 = scmp.le.s32.totalorder 1, %s30
      %p510 = scmp.lt.s32.totalorder %s30, 3
      %p511 = pnand %p509, %p510
      %p512 = pneg %p511
      // Predicated region
      $region73: #{tpu_custom_call.1} parent=5 // pred_check
        _
      $region74: #{tpu_custom_call.1} parent=5 // pred_check_branch
        %514 = sbr.rel (%p511) target = $region76
      $region75: #{tpu_custom_call.1} parent=5 // pred_region
        %s515 = ssub.s32 %s30, 1
        %s516 = sand.u32 %s43, 1
        %s517 = scalar_lea.sflag [#allocation3], %s516
        %s518 = sand.u32 %s43, 1
        %s519 = smul.addr %s518, 8
        %s520 = scalar_lea.vmem [#allocation2], %s519
        // Predicated region
        $region77: #{tpu_custom_call.1} parent=75 // pred_check
          %p521 = pneg %p56
        $region78: #{tpu_custom_call.1} parent=75 // pred_check_branch
          %523 = sbr.rel (%p521) target = $region80
        $region79: #{tpu_custom_call.1} parent=75 // pred_region
          %524 = dma.done %s517, 128
        $region80: #{tpu_custom_call.1} parent=75 // pred_fallthru
          _
        // Predicated region
        $region81: #{tpu_custom_call.1} parent=75 // pred_check
          %p525 = pneg %p119
        $region82: #{tpu_custom_call.1} parent=75 // pred_check_branch
          %527 = sbr.rel (%p525) target = $region84
        $region83: #{tpu_custom_call.1} parent=75 // pred_region
          %528 = dma.done [#allocation6], 128
        $region84: #{tpu_custom_call.1} parent=75 // pred_fallthru
          _
        // Predicated region
        $region85: #{tpu_custom_call.1} parent=75 // pred_check
          %p529 = pneg %p203
        $region86: #{tpu_custom_call.1} parent=75 // pred_check_branch
          %531 = sbr.rel (%p529) target = $region88
        $region87: #{tpu_custom_call.1} parent=75 // pred_region
          %532 = dma.done [#allocation6], 1024
        $region88: #{tpu_custom_call.1} parent=75 // pred_fallthru
          _
        // Predicated region
        $region89: #{tpu_custom_call.1} parent=75 // pred_check
          %p533 = pneg %p224
        $region90: #{tpu_custom_call.1} parent=75 // pred_check_branch
          %535 = sbr.rel (%p533) target = $region92
        $region91: #{tpu_custom_call.1} parent=75 // pred_region
          %536 = dma.done [#allocation9], 1024
        $region92: #{tpu_custom_call.1} parent=75 // pred_fallthru
          _
        // Predicated region
        $region93: #{tpu_custom_call.1} parent=75 // pred_check
          %p537 = pneg %p245
        $region94: #{tpu_custom_call.1} parent=75 // pred_check_branch
          %539 = sbr.rel (%p537) target = $region96
        $region95: #{tpu_custom_call.1} parent=75 // pred_region
          %540 = dma.done [#allocation9], 1024
        $region96: #{tpu_custom_call.1} parent=75 // pred_fallthru
          _
        // Predicated region
        $region97: #{tpu_custom_call.1} parent=75 // pred_check
          %p541 = pneg %p266
        $region98: #{tpu_custom_call.1} parent=75 // pred_check_branch
          %543 = sbr.rel (%p541) target = $region100
        $region99: #{tpu_custom_call.1} parent=75 // pred_region
          %544 = dma.done [#allocation12], 1024
        $region100: #{tpu_custom_call.1} parent=75 // pred_fallthru
          _
        // Predicated region
        $region101: #{tpu_custom_call.1} parent=75 // pred_check
          %p545 = pneg %p287
        $region102: #{tpu_custom_call.1} parent=75 // pred_check_branch
          %547 = sbr.rel (%p545) target = $region104
        $region103: #{tpu_custom_call.1} parent=75 // pred_region
          %548 = dma.done [#allocation12], 2048
        $region104: #{tpu_custom_call.1} parent=75 // pred_fallthru
          _
        // Predicated region
        $region105: #{tpu_custom_call.1} parent=75 // pred_check
          %p549 = pneg %p308
        $region106: #{tpu_custom_call.1} parent=75 // pred_check_branch
          %551 = sbr.rel (%p549) target = $region108
        $region107: #{tpu_custom_call.1} parent=75 // pred_region
          %552 = dma.done [#allocation15], 2048
        $region108: #{tpu_custom_call.1} parent=75 // pred_fallthru
          _
        // Predicated region
        $region109: #{tpu_custom_call.1} parent=75 // pred_check
          %p553 = pneg %p329
        $region110: #{tpu_custom_call.1} parent=75 // pred_check_branch
          %555 = sbr.rel (%p553) target = $region112
        $region111: #{tpu_custom_call.1} parent=75 // pred_region
          %556 = dma.done [#allocation15], 2048
        $region112: #{tpu_custom_call.1} parent=75 // pred_fallthru
          _
        %s557 = sand.u32 %s43, 1
        %s558 = scalar_lea.sflag [#allocation3], %s557
        %s559 = sand.u32 %s43, 1
        %s560 = smul.addr %s559, 8
        %s561 = scalar_lea.vmem [#allocation2], %s560
        %p562 = pneg %p56
        %p563 = pneg %p53
        %p564 = pneg %p77
        %p565 = pneg %p74
        %p566 = pneg %p98
        %p567 = pneg %p95
        %p568 = pneg %p119
        %p569 = pneg %p116
        %p570 = pneg %p140
        %p571 = pneg %p137
        %p572 = pneg %p161
        %p573 = pneg %p158
        %p574 = pneg %p182
        %p575 = pneg %p179
        %p576 = pneg %p203
        %p577 = pneg %p200
        %p578 = pneg %p224
        %p579 = pneg %p221
        %p580 = pneg %p245
        %p581 = pneg %p242
        %p582 = pneg %p266
        %p583 = pneg %p263
        %p584 = pneg %p287
        %p585 = pneg %p284
        %p586 = pneg %p308
        %p587 = pneg %p305
        %p588 = pneg %p329
        %p589 = pneg %p326
        %p590 = pneg %p355
        %p591 = pneg %p352
        %s592 = sand.u32 %s342, 1
        %s593 = scalar_lea.sflag [#allocation4], %s592
        %s594 = sand.u32 %s342, 1
        %s595 = smul.addr %s594, 8
        %s596 = scalar_lea.vmem [#allocation17], %s595
        %v598 = vld [vmem:[%s520] sm:$0xff]
        %v599 = vld [vmem:[%s1] sm:$0xff]
        %v600 = vld [vmem:[%s2] sm:$0xff]
        %v601 = vld [vmem:[#allocation5] sm:$0xff]
        %v602 = vld [vmem:[%s6] sm:$0x7f]
        %v603 = vld [vmem:[%s4] sm:$0x1]
        %v604 = vmul.f32 %v598, %v598
        %605 = vadd.xlane.f32.xlu0 %v604
        %v606 = vpop.xlane.xlu0 %605
        %v607 = vrcp.pop 128.0
        %v608 = vmul.f32 %v606, %v607
        %v609 = vadd.f32 %v608, 1e-06
        %v610 = vrsqrt.pop %v609
        %v611 = vmul.f32 %v598, %v610
        %v613 = vlaneseq
        %v614 = vshrl.u32 %v613, 7
        %v615 = vsub.s32 0, %v614
        %v616 = vrot.slane %v603, %v615
        %v618 = vmul.f32 %v611, %v616
        %v619 = vand.u32 2147483647, %v618
        %620 = vmax.xlane.f32.xlu0 %v619
        %v621 = vpop.xlane.xlu0 %620
        %v622 = vmax.f32 %v621, 1e-05
        %v623 = vrcp.pop %v622
        %v624 = vmul.f32 127.0, %v623
        %v625 = vmul.f32 %v618, %v624
        %v626 = vround.ne.pseudo %v625
        %v627 = vmax.f32 %v626, -128.0
        %v628 = vmin.f32 %v627, 127.0
        %v629 = vpack.c.bf16 %v628, %v628
        %v630 = vmul.f32 %v622, 0.007874016
        %v631 = vld [vmem:[#allocation7] sm:$0xf]
        %v632 = vld [vmem:[#allocation7 + $0x4] sm:$0xf]
        %v633 = vld [vmem:[#allocation7 + $0x8] sm:$0xf]
        %v634 = vld [vmem:[#allocation7 + $0xc] sm:$0xf]
        %v635 = vld [vmem:[#allocation7 + $0x10] sm:$0xf]
        %v636 = vld [vmem:[#allocation7 + $0x14] sm:$0xf]
        %v637 = vld [vmem:[#allocation7 + $0x18] sm:$0xf]
        %v638 = vld [vmem:[#allocation7 + $0x1c] sm:$0xf]
        %v639 = vld [vmem:[#allocation7 + $0x20] sm:$0xf]
        %v640 = vld [vmem:[#allocation7 + $0x24] sm:$0xf]
        %v641 = vld [vmem:[#allocation7 + $0x28] sm:$0xf]
        %v642 = vld [vmem:[#allocation7 + $0x2c] sm:$0xf]
        %v643 = vld [vmem:[#allocation7 + $0x30] sm:$0xf]
        %v644 = vld [vmem:[#allocation7 + $0x34] sm:$0xf]
        %v645 = vld [vmem:[#allocation7 + $0x38] sm:$0xf]
        %v646 = vld [vmem:[#allocation7 + $0x3c] sm:$0xf]
        %v663 = vunpack.c.l.b16 %v631
        %v664 = vunpack.c.l.b16 %v632
        %v665 = vunpack.c.l.b16 %v633
        %v666 = vunpack.c.l.b16 %v634
        %v667 = vunpack.c.l.b16 %v635
        %v668 = vunpack.c.l.b16 %v636
        %v669 = vunpack.c.l.b16 %v637
        %v670 = vunpack.c.l.b16 %v638
        %v671 = vunpack.c.l.b16 %v639
        %v672 = vunpack.c.l.b16 %v640
        %v673 = vunpack.c.l.b16 %v641
        %v674 = vunpack.c.l.b16 %v642
        %v675 = vunpack.c.l.b16 %v643
        %v676 = vunpack.c.l.b16 %v644
        %v677 = vunpack.c.l.b16 %v645
        %v678 = vunpack.c.l.b16 %v646
        %v679 = vpack.c.b16 %v664, %v663
        %v680 = vpack.c.b16 %v666, %v665
        %v681 = vpack.c.b16 %v668, %v667
        %v682 = vpack.c.b16 %v670, %v669
        %v683 = vpack.c.b16 %v672, %v671
        %v684 = vpack.c.b16 %v674, %v673
        %v685 = vpack.c.b16 %v676, %v675
        %v686 = vpack.c.b16 %v678, %v677
        %695 = vmatprep.subr.bf16.mxu0 0
        %696 = vmatpush1.bf16.msra.mxu0 %v679
        %697 = vmatprep.subr.bf16.mxu0 0
        %698 = vmatpush1.bf16.msra.mxu0 %v680
        %699 = vmatprep.subr.bf16.mxu0 0
        %700 = vmatpush1.bf16.msra.mxu0 %v681
        %701 = vmatprep.subr.bf16.mxu0 0
        %702 = vmatpush1.bf16.msra.mxu0 %v682
        %703 = vmatprep.subr.bf16.mxu0 0
        %704 = vmatpush1.bf16.msra.mxu0 %v683
        %705 = vmatprep.subr.bf16.mxu0 0
        %706 = vmatpush1.bf16.msra.mxu0 %v684
        %707 = vmatprep.subr.bf16.mxu0 0
        %708 = vmatpush1.bf16.msra.mxu0 %v685
        %709 = vmatprep.subr.bf16.mxu0 0
        %710 = vmatpush1.bf16.msra.mxu0 %v686
        %711 = vmatprep.subr.bf16.mxu0 0
        %712 = vmatpush1.bf16.msra.mxu0 0
        %713 = vmatprep.subr.bf16.mxu0 0
        %714 = vmatpush1.bf16.msra.mxu0 0
        %715 = vmatprep.subr.bf16.mxu0 0
        %716 = vmatpush1.bf16.msra.mxu0 0
        %717 = vmatprep.subr.bf16.mxu0 0
        %718 = vmatpush1.bf16.msra.mxu0 0
        %719 = vmatprep.subr.bf16.mxu0 0
        %720 = vmatpush1.bf16.msra.mxu0 0
        %721 = vmatprep.subr.bf16.mxu0 0
        %722 = vmatpush1.bf16.msra.mxu0 0
        %723 = vmatprep.subr.bf16.mxu0 0
        %724 = vmatpush1.bf16.msra.mxu0 0
        %725 = vmatprep.subr.bf16.mxu0 0
        %726 = vmatpush1.bf16.msra.mxu0 0
        %727 = vmatprep.mubr.bf16.mxu0 0
        %728 = vmatmul.mubr.bf16.gmra.mrb[0].mxu0 %v629
        %v729 = vpop.f32.mrb[0].mxu0
        %v730 = vadd.f32 0.0, %v729
        %v731 = vpop.f32.mrb[0].mxu0
        %v732 = vpop.f32.mrb[0].mxu0
        %v733 = vpop.f32.mrb[0].mxu0
        %734 = vdwg.mxu0
        %v735 = vlaneseq
        %v736 = vshrl.u32 %v735, 7
        %v737 = vsub.s32 0, %v736
        %v738 = vrot.slane %v602, %v737
        %v739 = vmul.f32 %v630, %v738
        %741 = vset.pattern.permute.xlu0 0
        %742 = vperm.xlu0 %741, %v739
        %v743 = vpop.permute.xlu0 %742
        %v745 = vmul.f32 %v730, %v743
        %747 = vrot.lane.b32.xlu0 %v745, 96
        %v748 = vpop.permute.xlu0 %747
        %750 = vrot.lane.b32.xlu0 %v745, 64
        %v751 = vpop.permute.xlu0 %750
        %753 = vrot.lane.b32.xlu0 %v745, 32
        %v754 = vpop.permute.xlu0 %753
        %v756 = vld [vmem:[#allocation8] sm:$0xf]
        %v757 = vld [vmem:[#allocation8 + $0x4] sm:$0xf]
        %v758 = vld [vmem:[#allocation8 + $0x8] sm:$0xf]
        %v759 = vld [vmem:[#allocation8 + $0xc] sm:$0xf]
        %v760 = vld [vmem:[#allocation8 + $0x10] sm:$0xf]
        %v761 = vld [vmem:[#allocation8 + $0x14] sm:$0xf]
        %v762 = vld [vmem:[#allocation8 + $0x18] sm:$0xf]
        %v763 = vld [vmem:[#allocation8 + $0x1c] sm:$0xf]
        %v764 = vld [vmem:[#allocation8 + $0x20] sm:$0xf]
        %v765 = vld [vmem:[#allocation8 + $0x24] sm:$0xf]
        %v766 = vld [vmem:[#allocation8 + $0x28] sm:$0xf]
        %v767 = vld [vmem:[#allocation8 + $0x2c] sm:$0xf]
        %v768 = vld [vmem:[#allocation8 + $0x30] sm:$0xf]
        %v769 = vld [vmem:[#allocation8 + $0x34] sm:$0xf]
        %v770 = vld [vmem:[#allocation8 + $0x38] sm:$0xf]
        %v771 = vld [vmem:[#allocation8 + $0x3c] sm:$0xf]
        %v788 = vunpack.c.l.b16 %v756
        %v789 = vunpack.c.l.b16 %v757
        %v790 = vunpack.c.l.b16 %v758
        %v791 = vunpack.c.l.b16 %v759
        %v792 = vunpack.c.l.b16 %v760
        %v793 = vunpack.c.l.b16 %v761
        %v794 = vunpack.c.l.b16 %v762
        %v795 = vunpack.c.l.b16 %v763
        %v796 = vunpack.c.l.b16 %v764
        %v797 = vunpack.c.l.b16 %v765
        %v798 = vunpack.c.l.b16 %v766
        %v799 = vunpack.c.l.b16 %v767
        %v800 = vunpack.c.l.b16 %v768
        %v801 = vunpack.c.l.b16 %v769
        %v802 = vunpack.c.l.b16 %v770
        %v803 = vunpack.c.l.b16 %v771
        %v804 = vpack.c.b16 %v789, %v788
        %v805 = vpack.c.b16 %v791, %v790
        %v806 = vpack.c.b16 %v793, %v792
        %v807 = vpack.c.b16 %v795, %v794
        %v808 = vpack.c.b16 %v797, %v796
        %v809 = vpack.c.b16 %v799, %v798
        %v810 = vpack.c.b16 %v801, %v800
        %v811 = vpack.c.b16 %v803, %v802
        %820 = vmatprep.subr.bf16.mxu0 0
        %821 = vmatpush1.bf16.msra.mxu0 %v804
        %822 = vmatprep.subr.bf16.mxu0 0
        %823 = vmatpush1.bf16.msra.mxu0 %v805
        %824 = vmatprep.subr.bf16.mxu0 0
        %825 = vmatpush1.bf16.msra.mxu0 %v806
        %826 = vmatprep.subr.bf16.mxu0 0
        %827 = vmatpush1.bf16.msra.mxu0 %v807
        %828 = vmatprep.subr.bf16.mxu0 0
        %829 = vmatpush1.bf16.msra.mxu0 %v808
        %830 = vmatprep.subr.bf16.mxu0 0
        %831 = vmatpush1.bf16.msra.mxu0 %v809
        %832 = vmatprep.subr.bf16.mxu0 0
        %833 = vmatpush1.bf16.msra.mxu0 %v810
        %834 = vmatprep.subr.bf16.mxu0 0
        %835 = vmatpush1.bf16.msra.mxu0 %v811
        %836 = vmatprep.subr.bf16.mxu0 0
        %837 = vmatpush1.bf16.msra.mxu0 0
        %838 = vmatprep.subr.bf16.mxu0 0
        %839 = vmatpush1.bf16.msra.mxu0 0
        %840 = vmatprep.subr.bf16.mxu0 0
        %841 = vmatpush1.bf16.msra.mxu0 0
        %842 = vmatprep.subr.bf16.mxu0 0
        %843 = vmatpush1.bf16.msra.mxu0 0
        %844 = vmatprep.subr.bf16.mxu0 0
        %845 = vmatpush1.bf16.msra.mxu0 0
        %846 = vmatprep.subr.bf16.mxu0 0
        %847 = vmatpush1.bf16.msra.mxu0 0
        %848 = vmatprep.subr.bf16.mxu0 0
        %849 = vmatpush1.bf16.msra.mxu0 0
        %850 = vmatprep.subr.bf16.mxu0 0
        %851 = vmatpush1.bf16.msra.mxu0 0
        %852 = vmatprep.mubr.bf16.mxu0 0
        %853 = vmatmul.mubr.bf16.gmra.mrb[0].mxu0 %v629
        %v854 = vpop.f32.mrb[0].mxu0
        %v855 = vadd.f32 0.0, %v854
        %v856 = vpop.f32.mrb[0].mxu0
        %v857 = vpop.f32.mrb[0].mxu0
        %v858 = vpop.f32.mrb[0].mxu0
        %859 = vdwg.mxu0
        %v860 = vlaneseq
        %v861 = vshrl.u32 %v860, 7
        %v862 = vsub.s32 1, %v861
        %v863 = vrot.slane %v602, %v862
        %v864 = vmul.f32 %v630, %v863
        %866 = vset.pattern.permute.xlu0 0
        %867 = vperm.xlu0 %866, %v864
        %v868 = vpop.permute.xlu0 %867
        %v870 = vmul.f32 %v855, %v868
        %872 = vrot.lane.b32.xlu0 %v870, 96
        %v873 = vpop.permute.xlu0 %872
        %875 = vrot.lane.b32.xlu0 %v870, 64
        %v876 = vpop.permute.xlu0 %875
        %878 = vrot.lane.b32.xlu0 %v870, 32
        %v879 = vpop.permute.xlu0 %878
        %v881 = vld [vmem:[#allocation10] sm:$0xf]
        %v882 = vld [vmem:[#allocation10 + $0x4] sm:$0xf]
        %v883 = vld [vmem:[#allocation10 + $0x8] sm:$0xf]
        %v884 = vld [vmem:[#allocation10 + $0xc] sm:$0xf]
        %v885 = vld [vmem:[#allocation10 + $0x10] sm:$0xf]
        %v886 = vld [vmem:[#allocation10 + $0x14] sm:$0xf]
        %v887 = vld [vmem:[#allocation10 + $0x18] sm:$0xf]
        %v888 = vld [vmem:[#allocation10 + $0x1c] sm:$0xf]
        %v889 = vld [vmem:[#allocation10 + $0x20] sm:$0xf]
        %v890 = vld [vmem:[#allocation10 + $0x24] sm:$0xf]
        %v891 = vld [vmem:[#allocation10 + $0x28] sm:$0xf]
        %v892 = vld [vmem:[#allocation10 + $0x2c] sm:$0xf]
        %v893 = vld [vmem:[#allocation10 + $0x30] sm:$0xf]
        %v894 = vld [vmem:[#allocation10 + $0x34] sm:$0xf]
        %v895 = vld [vmem:[#allocation10 + $0x38] sm:$0xf]
        %v896 = vld [vmem:[#allocation10 + $0x3c] sm:$0xf]
        %v913 = vunpack.c.l.b16 %v881
        %v914 = vunpack.c.l.b16 %v882
        %v915 = vunpack.c.l.b16 %v883
        %v916 = vunpack.c.l.b16 %v884
        %v917 = vunpack.c.l.b16 %v885
        %v918 = vunpack.c.l.b16 %v886
        %v919 = vunpack.c.l.b16 %v887
        %v920 = vunpack.c.l.b16 %v888
        %v921 = vunpack.c.l.b16 %v889
        %v922 = vunpack.c.l.b16 %v890
        %v923 = vunpack.c.l.b16 %v891
        %v924 = vunpack.c.l.b16 %v892
        %v925 = vunpack.c.l.b16 %v893
        %v926 = vunpack.c.l.b16 %v894
        %v927 = vunpack.c.l.b16 %v895
        %v928 = vunpack.c.l.b16 %v896
        %v929 = vpack.c.b16 %v914, %v913
        %v930 = vpack.c.b16 %v916, %v915
        %v931 = vpack.c.b16 %v918, %v917
        %v932 = vpack.c.b16 %v920, %v919
        %v933 = vpack.c.b16 %v922, %v921
        %v934 = vpack.c.b16 %v924, %v923
        %v935 = vpack.c.b16 %v926, %v925
        %v936 = vpack.c.b16 %v928, %v927
        %945 = vmatprep.subr.bf16.mxu0 0
        %946 = vmatpush1.bf16.msra.mxu0 %v929
        %947 = vmatprep.subr.bf16.mxu0 0
        %948 = vmatpush1.bf16.msra.mxu0 %v930
        %949 = vmatprep.subr.bf16.mxu0 0
        %950 = vmatpush1.bf16.msra.mxu0 %v931
        %951 = vmatprep.subr.bf16.mxu0 0
        %952 = vmatpush1.bf16.msra.mxu0 %v932
        %953 = vmatprep.subr.bf16.mxu0 0
        %954 = vmatpush1.bf16.msra.mxu0 %v933
        %955 = vmatprep.subr.bf16.mxu0 0
        %956 = vmatpush1.bf16.msra.mxu0 %v934
        %957 = vmatprep.subr.bf16.mxu0 0
        %958 = vmatpush1.bf16.msra.mxu0 %v935
        %959 = vmatprep.subr.bf16.mxu0 0
        %960 = vmatpush1.bf16.msra.mxu0 %v936
        %961 = vmatprep.subr.bf16.mxu0 0
        %962 = vmatpush1.bf16.msra.mxu0 0
        %963 = vmatprep.subr.bf16.mxu0 0
        %964 = vmatpush1.bf16.msra.mxu0 0
        %965 = vmatprep.subr.bf16.mxu0 0
        %966 = vmatpush1.bf16.msra.mxu0 0
        %967 = vmatprep.subr.bf16.mxu0 0
        %968 = vmatpush1.bf16.msra.mxu0 0
        %969 = vmatprep.subr.bf16.mxu0 0
        %970 = vmatpush1.bf16.msra.mxu0 0
        %971 = vmatprep.subr.bf16.mxu0 0
        %972 = vmatpush1.bf16.msra.mxu0 0
        %973 = vmatprep.subr.bf16.mxu0 0
        %974 = vmatpush1.bf16.msra.mxu0 0
        %975 = vmatprep.subr.bf16.mxu0 0
        %976 = vmatpush1.bf16.msra.mxu0 0
        %977 = vmatprep.mubr.bf16.mxu0 0
        %978 = vmatmul.mubr.bf16.gmra.mrb[0].mxu0 %v629
        %v979 = vpop.f32.mrb[0].mxu0
        %v980 = vadd.f32 0.0, %v979
        %v981 = vpop.f32.mrb[0].mxu0
        %v982 = vpop.f32.mrb[0].mxu0
        %v983 = vpop.f32.mrb[0].mxu0
        %984 = vdwg.mxu0
        %v985 = vlaneseq
        %v986 = vshrl.u32 %v985, 7
        %v987 = vsub.s32 2, %v986
        %v988 = vrot.slane %v602, %v987
        %v989 = vmul.f32 %v630, %v988
        %991 = vset.pattern.permute.xlu0 0
        %992 = vperm.xlu0 %991, %v989
        %v993 = vpop.permute.xlu0 %992
        %v995 = vmul.f32 %v980, %v993
        %997 = vrot.lane.b32.xlu0 %v995, 96
        %v998 = vpop.permute.xlu0 %997
        %1000 = vrot.lane.b32.xlu0 %v995, 64
        %v1001 = vpop.permute.xlu0 %1000
        %1003 = vrot.lane.b32.xlu0 %v995, 32
        %v1004 = vpop.permute.xlu0 %1003
        %v1006 = vmul.f32 %v745, %v600
        %v1007 = vmul.f32 %v748, %v600
        %v1008 = vmul.f32 %v751, %v600
        %v1009 = vmul.f32 %v754, %v600
        %v1010 = vsub.f32 0.0, %v745
        %v1011 = vsub.f32 0.0, %v748
        %v1012 = vsub.f32 0.0, %v751
        %v1013 = vsub.f32 0.0, %v754
        %1018 = vrot.lane.b32.xlu0 %v1010, 112
        %v1019 = vpop.permute.xlu0 %1018
        %1020 = vrot.lane.b32.xlu0 %v1011, 112
        %v1021 = vpop.permute.xlu0 %1020
        %1022 = vrot.lane.b32.xlu0 %v1012, 112
        %v1023 = vpop.permute.xlu0 %1022
        %1024 = vrot.lane.b32.xlu0 %v1013, 112
        %v1025 = vpop.permute.xlu0 %1024
        %1030 = vrot.lane.b32.xlu0 %v745, 16
        %v1031 = vpop.permute.xlu0 %1030
        %1032 = vrot.lane.b32.xlu0 %v748, 16
        %v1033 = vpop.permute.xlu0 %1032
        %1034 = vrot.lane.b32.xlu0 %v751, 16
        %v1035 = vpop.permute.xlu0 %1034
        %1036 = vrot.lane.b32.xlu0 %v754, 16
        %v1037 = vpop.permute.xlu0 %1036
        %vm1042 = vcmask 130048
        %v1043 = vsel %vm1042, %v1019, %v1031
        %v1044 = vsel %vm1042, %v1021, %v1033
        %v1045 = vsel %vm1042, %v1023, %v1035
        %v1046 = vsel %vm1042, %v1025, %v1037
        %v1047 = vmul.f32 %v1043, %v601
        %v1048 = vmul.f32 %v1044, %v601
        %v1049 = vmul.f32 %v1045, %v601
        %v1050 = vmul.f32 %v1046, %v601
        %v1051 = vadd.f32 %v1006, %v1047
        %v1052 = vadd.f32 %v1007, %v1048
        %v1053 = vadd.f32 %v1008, %v1049
        %v1054 = vadd.f32 %v1009, %v1050
        %v1055 = vmul.f32 %v870, %v600
        %v1056 = vmul.f32 %v873, %v600
        %v1057 = vmul.f32 %v876, %v600
        %v1058 = vmul.f32 %v879, %v600
        %v1059 = vsub.f32 0.0, %v870
        %v1060 = vsub.f32 0.0, %v873
        %v1061 = vsub.f32 0.0, %v876
        %v1062 = vsub.f32 0.0, %v879
        %1067 = vrot.lane.b32.xlu0 %v1059, 112
        %v1068 = vpop.permute.xlu0 %1067
        %1069 = vrot.lane.b32.xlu0 %v1060, 112
        %v1070 = vpop.permute.xlu0 %1069
        %1071 = vrot.lane.b32.xlu0 %v1061, 112
        %v1072 = vpop.permute.xlu0 %1071
        %1073 = vrot.lane.b32.xlu0 %v1062, 112
        %v1074 = vpop.permute.xlu0 %1073
        %1079 = vrot.lane.b32.xlu0 %v870, 16
        %v1080 = vpop.permute.xlu0 %1079
        %1081 = vrot.lane.b32.xlu0 %v873, 16
        %v1082 = vpop.permute.xlu0 %1081
        %1083 = vrot.lane.b32.xlu0 %v876, 16
        %v1084 = vpop.permute.xlu0 %1083
        %1085 = vrot.lane.b32.xlu0 %v879, 16
        %v1086 = vpop.permute.xlu0 %1085
        %v1091 = vsel %vm1042, %v1068, %v1080
        %v1092 = vsel %vm1042, %v1070, %v1082
        %v1093 = vsel %vm1042, %v1072, %v1084
        %v1094 = vsel %vm1042, %v1074, %v1086
        %v1095 = vmul.f32 %v1091, %v601
        %v1096 = vmul.f32 %v1092, %v601
        %v1097 = vmul.f32 %v1093, %v601
        %v1098 = vmul.f32 %v1094, %v601
        %v1099 = vadd.f32 %v1055, %v1095
        %v1100 = vadd.f32 %v1056, %v1096
        %v1101 = vadd.f32 %v1057, %v1097
        %v1102 = vadd.f32 %v1058, %v1098
        %v1103 = vpack.c.bf16 %v1051, %v1051
        %v1104 = vpack.c.bf16 %v1052, %v1052
        %v1105 = vpack.c.bf16 %v1053, %v1053
        %v1106 = vpack.c.bf16 %v1054, %v1054
        %v1107 = vpack.c.bf16 %v1099, %v1099
        %v1108 = vpack.c.bf16 %v1100, %v1100
        %v1109 = vpack.c.bf16 %v1101, %v1101
        %v1110 = vpack.c.bf16 %v1102, %v1102
        %vm1111 = vcmask 261120
        %v1113 = vsel %vm1111, %v1103, 0
        %v1116 = vsel %vm1111, %v1107, 0
        %1118 = vmatprep.subr.bf16.mxu0 0
        %1119 = vmatpush1.bf16.xpose.msra.mxu0 %v1116
        %1120 = vmatprep.subr.bf16.mxu0 0
        %1121 = vmatpush1.bf16.xpose.msra.mxu0 0
        %1122 = vmatprep.subr.bf16.mxu0 0
        %1123 = vmatpush1.bf16.xpose.msra.mxu0 0
        %1124 = vmatprep.subr.bf16.mxu0 0
        %1125 = vmatpush1.bf16.xpose.msra.mxu0 0
        %1126 = vmatprep.subr.bf16.mxu0 0
        %1127 = vmatpush1.bf16.xpose.msra.mxu0 0
        %1128 = vmatprep.subr.bf16.mxu0 0
        %1129 = vmatpush1.bf16.xpose.msra.mxu0 0
        %1130 = vmatprep.subr.bf16.mxu0 0
        %1131 = vmatpush1.bf16.xpose.msra.mxu0 0
        %1132 = vmatprep.subr.bf16.mxu0 0
        %1133 = vmatpush1.bf16.xpose.msra.mxu0 0
        %1134 = vmatprep.subr.bf16.mxu0 0
        %1135 = vmatpush1.bf16.xpose.msra.mxu0 0
        %1136 = vmatprep.subr.bf16.mxu0 0
        %1137 = vmatpush1.bf16.xpose.msra.mxu0 0
        %1138 = vmatprep.subr.bf16.mxu0 0
        %1139 = vmatpush1.bf16.xpose.msra.mxu0 0
        %1140 = vmatprep.subr.bf16.mxu0 0
        %1141 = vmatpush1.bf16.xpose.msra.mxu0 0
        %1142 = vmatprep.subr.bf16.mxu0 0
        %1143 = vmatpush1.bf16.xpose.msra.mxu0 0
        %1144 = vmatprep.subr.bf16.mxu0 0
        %1145 = vmatpush1.bf16.xpose.msra.mxu0 0
        %1146 = vmatprep.subr.bf16.mxu0 0
        %1147 = vmatpush1.bf16.xpose.msra.mxu0 0
        %1148 = vmatprep.subr.bf16.mxu0 0
        %1149 = vmatpush1.bf16.xpose.msra.mxu0 0
        %1150 = vmatprep.mubr.bf16.mxu0 0
        %1151 = vmatmul.mubr.bf16.gmra.mrb[0].mxu0 %v1113
        %v1152 = vpop.f32.mrb[0].mxu0
        %v1153 = vadd.f32 0.0, %v1152
        %v1154 = vpop.f32.mrb[0].mxu0
        %v1155 = vpop.f32.mrb[0].mxu0
        %v1156 = vpop.f32.mrb[0].mxu0
        %1157 = vdwg.mxu0
        %v1159 = vsel %vm1111, %v1104, 0
        %v1162 = vsel %vm1111, %v1108, 0
        %1164 = vmatprep.subr.bf16.mxu0 0
        %1165 = vmatpush1.bf16.xpose.msra.mxu0 %v1162
        %1166 = vmatprep.subr.bf16.mxu0 0
        %1167 = vmatpush1.bf16.xpose.msra.mxu0 0
        %1168 = vmatprep.subr.bf16.mxu0 0
        %1169 = vmatpush1.bf16.xpose.msra.mxu0 0
        %1170 = vmatprep.subr.bf16.mxu0 0
        %1171 = vmatpush1.bf16.xpose.msra.mxu0 0
        %1172 = vmatprep.subr.bf16.mxu0 0
        %1173 = vmatpush1.bf16.xpose.msra.mxu0 0
        %1174 = vmatprep.subr.bf16.mxu0 0
        %1175 = vmatpush1.bf16.xpose.msra.mxu0 0
        %1176 = vmatprep.subr.bf16.mxu0 0
        %1177 = vmatpush1.bf16.xpose.msra.mxu0 0
        %1178 = vmatprep.subr.bf16.mxu0 0
        %1179 = vmatpush1.bf16.xpose.msra.mxu0 0
        %1180 = vmatprep.subr.bf16.mxu0 0
        %1181 = vmatpush1.bf16.xpose.msra.mxu0 0
        %1182 = vmatprep.subr.bf16.mxu0 0
        %1183 = vmatpush1.bf16.xpose.msra.mxu0 0
        %1184 = vmatprep.subr.bf16.mxu0 0
        %1185 = vmatpush1.bf16.xpose.msra.mxu0 0
        %1186 = vmatprep.subr.bf16.mxu0 0
        %1187 = vmatpush1.bf16.xpose.msra.mxu0 0
        %1188 = vmatprep.subr.bf16.mxu0 0
        %1189 = vmatpush1.bf16.xpose.msra.mxu0 0
        %1190 = vmatprep.subr.bf16.mxu0 0
        %1191 = vmatpush1.bf16.xpose.msra.mxu0 0
        %1192 = vmatprep.subr.bf16.mxu0 0
        %1193 = vmatpush1.bf16.xpose.msra.mxu0 0
        %1194 = vmatprep.subr.bf16.mxu0 0
        %1195 = vmatpush1.bf16.xpose.msra.mxu0 0
        %1196 = vmatprep.mubr.bf16.mxu0 0
        %1197 = vmatmul.mubr.bf16.gmra.mrb[0].mxu0 %v1159
        %v1198 = vpop.f32.mrb[0].mxu0
        %v1199 = vadd.f32 0.0, %v1198
        %v1200 = vpop.f32.mrb[0].mxu0
        %v1201 = vpop.f32.mrb[0].mxu0
        %v1202 = vpop.f32.mrb[0].mxu0
        %1203 = vdwg.mxu0
        %v1205 = vsel %vm1111, %v1105, 0
        %v1208 = vsel %vm1111, %v1109, 0
        %1210 = vmatprep.subr.bf16.mxu0 0
        %1211 = vmatpush1.bf16.xpose.msra.mxu0 %v1208
        %1212 = vmatprep.subr.bf16.mxu0 0
        %1213 = vmatpush1.bf16.xpose.msra.mxu0 0
        %1214 = vmatprep.subr.bf16.mxu0 0
        %1215 = vmatpush1.bf16.xpose.msra.mxu0 0
        %1216 = vmatprep.subr.bf16.mxu0 0
        %1217 = vmatpush1.bf16.xpose.msra.mxu0 0
        %1218 = vmatprep.subr.bf16.mxu0 0
        %1219 = vmatpush1.bf16.xpose.msra.mxu0 0
        %1220 = vmatprep.subr.bf16.mxu0 0
        %1221 = vmatpush1.bf16.xpose.msra.mxu0 0
        %1222 = vmatprep.subr.bf16.mxu0 0
        %1223 = vmatpush1.bf16.xpose.msra.mxu0 0
        %1224 = vmatprep.subr.bf16.mxu0 0
        %1225 = vmatpush1.bf16.xpose.msra.mxu0 0
        %1226 = vmatprep.subr.bf16.mxu0 0
        %1227 = vmatpush1.bf16.xpose.msra.mxu0 0
        %1228 = vmatprep.subr.bf16.mxu0 0
        %1229 = vmatpush1.bf16.xpose.msra.mxu0 0
        %1230 = vmatprep.subr.bf16.mxu0 0
        %1231 = vmatpush1.bf16.xpose.msra.mxu0 0
        %1232 = vmatprep.subr.bf16.mxu0 0
        %1233 = vmatpush1.bf16.xpose.msra.mxu0 0
        %1234 = vmatprep.subr.bf16.mxu0 0
        %1235 = vmatpush1.bf16.xpose.msra.mxu0 0
        %1236 = vmatprep.subr.bf16.mxu0 0
        %1237 = vmatpush1.bf16.xpose.msra.mxu0 0
        %1238 = vmatprep.subr.bf16.mxu0 0
        %1239 = vmatpush1.bf16.xpose.msra.mxu0 0
        %1240 = vmatprep.subr.bf16.mxu0 0
        %1241 = vmatpush1.bf16.xpose.msra.mxu0 0
        %1242 = vmatprep.mubr.bf16.mxu0 0
        %1243 = vmatmul.mubr.bf16.gmra.mrb[0].mxu0 %v1205
        %v1244 = vpop.f32.mrb[0].mxu0
        %v1245 = vadd.f32 0.0, %v1244
        %v1246 = vpop.f32.mrb[0].mxu0
        %v1247 = vpop.f32.mrb[0].mxu0
        %v1248 = vpop.f32.mrb[0].mxu0
        %1249 = vdwg.mxu0
        %v1251 = vsel %vm1111, %v1106, 0
        %v1254 = vsel %vm1111, %v1110, 0
        %1256 = vmatprep.subr.bf16.mxu0 0
        %1257 = vmatpush1.bf16.xpose.msra.mxu0 %v1254
        %1258 = vmatprep.subr.bf16.mxu0 0
        %1259 = vmatpush1.bf16.xpose.msra.mxu0 0
        %1260 = vmatprep.subr.bf16.mxu0 0
        %1261 = vmatpush1.bf16.xpose.msra.mxu0 0
        %1262 = vmatprep.subr.bf16.mxu0 0
        %1263 = vmatpush1.bf16.xpose.msra.mxu0 0
        %1264 = vmatprep.subr.bf16.mxu0 0
        %1265 = vmatpush1.bf16.xpose.msra.mxu0 0
        %1266 = vmatprep.subr.bf16.mxu0 0
        %1267 = vmatpush1.bf16.xpose.msra.mxu0 0
        %1268 = vmatprep.subr.bf16.mxu0 0
        %1269 = vmatpush1.bf16.xpose.msra.mxu0 0
        %1270 = vmatprep.subr.bf16.mxu0 0
        %1271 = vmatpush1.bf16.xpose.msra.mxu0 0
        %1272 = vmatprep.subr.bf16.mxu0 0
        %1273 = vmatpush1.bf16.xpose.msra.mxu0 0
        %1274 = vmatprep.subr.bf16.mxu0 0
        %1275 = vmatpush1.bf16.xpose.msra.mxu0 0
        %1276 = vmatprep.subr.bf16.mxu0 0
        %1277 = vmatpush1.bf16.xpose.msra.mxu0 0
        %1278 = vmatprep.subr.bf16.mxu0 0
        %1279 = vmatpush1.bf16.xpose.msra.mxu0 0
        %1280 = vmatprep.subr.bf16.mxu0 0
        %1281 = vmatpush1.bf16.xpose.msra.mxu0 0
        %1282 = vmatprep.subr.bf16.mxu0 0
        %1283 = vmatpush1.bf16.xpose.msra.mxu0 0
        %1284 = vmatprep.subr.bf16.mxu0 0
        %1285 = vmatpush1.bf16.xpose.msra.mxu0 0
        %1286 = vmatprep.subr.bf16.mxu0 0
        %1287 = vmatpush1.bf16.xpose.msra.mxu0 0
        %1288 = vmatprep.mubr.bf16.mxu0 0
        %1289 = vmatmul.mubr.bf16.gmra.mrb[0].mxu0 %v1251
        %v1290 = vpop.f32.mrb[0].mxu0
        %v1291 = vadd.f32 0.0, %v1290
        %v1292 = vpop.f32.mrb[0].mxu0
        %v1293 = vpop.f32.mrb[0].mxu0
        %v1294 = vpop.f32.mrb[0].mxu0
        %1295 = vdwg.mxu0
        %v1296 = vmul.f32 %v1153, 0.17677669
        %v1297 = vmul.f32 %v1199, 0.17677669
        %v1298 = vmul.f32 %v1245, 0.17677669
        %v1299 = vmul.f32 %v1291, 0.17677669
        %v1300 = vadd.f32 %v1296, %v599
        %v1301 = vadd.f32 %v1297, %v599
        %v1302 = vadd.f32 %v1298, %v599
        %v1303 = vadd.f32 %v1299, %v599
        %vm1304 = vcmask 64512
        %v1305 = vsel %vm1304, %v1300, -inf
        %1306 = vmax.xlane.f32.xlu0 %v1305
        %v1307 = vpop.xlane.xlu0 %1306
        %v1308 = vsel %vm1304, %v1301, -inf
        %1309 = vmax.xlane.f32.xlu0 %v1308
        %v1310 = vpop.xlane.xlu0 %1309
        %v1311 = vsel %vm1304, %v1302, -inf
        %1312 = vmax.xlane.f32.xlu0 %v1311
        %v1313 = vpop.xlane.xlu0 %1312
        %v1314 = vsel %vm1304, %v1303, -inf
        %1315 = vmax.xlane.f32.xlu0 %v1314
        %v1316 = vpop.xlane.xlu0 %1315
        %v1317 = vsub.f32 %v1300, %v1307
        %v1318 = vsub.f32 %v1301, %v1310
        %v1319 = vsub.f32 %v1302, %v1313
        %v1320 = vsub.f32 %v1303, %v1316
        %v1321 = vmul.f32 %v1317, 1.442695
        %v1322 = vpow.pop %v1321
        %v1323 = vmul.f32 %v1318, 1.442695
        %v1324 = vpow.pop %v1323
        %v1325 = vmul.f32 %v1319, 1.442695
        %v1326 = vpow.pop %v1325
        %v1327 = vmul.f32 %v1320, 1.442695
        %v1328 = vpow.pop %v1327
        %v1329 = vsel %vm1304, %v1322, 0.0
        %1330 = vadd.xlane.f32.xlu0 %v1329
        %v1331 = vpop.xlane.xlu0 %1330
        %v1332 = vsel %vm1304, %v1324, 0.0
        %1333 = vadd.xlane.f32.xlu0 %v1332
        %v1334 = vpop.xlane.xlu0 %1333
        %v1335 = vsel %vm1304, %v1326, 0.0
        %1336 = vadd.xlane.f32.xlu0 %v1335
        %v1337 = vpop.xlane.xlu0 %1336
        %v1338 = vsel %vm1304, %v1328, 0.0
        %1339 = vadd.xlane.f32.xlu0 %v1338
        %v1340 = vpop.xlane.xlu0 %1339
        %v1341 = vrcp.pop %v1331
        %v1342 = vrcp.pop %v1334
        %v1343 = vrcp.pop %v1337
        %v1344 = vrcp.pop %v1340
        %v1345 = vmul.f32 %v1322, %v1341
        %v1346 = vmul.f32 %v1324, %v1342
        %v1347 = vmul.f32 %v1326, %v1343
        %v1348 = vmul.f32 %v1328, %v1344
        %v1349 = vpack.c.bf16 %v1345, %v1345
        %v1350 = vpack.c.bf16 %v1346, %v1346
        %v1351 = vpack.c.bf16 %v1347, %v1347
        %v1352 = vpack.c.bf16 %v1348, %v1348
        %v1353 = vpack.c.bf16 %v995, %v995
        %v1354 = vpack.c.bf16 %v998, %v998
        %v1355 = vpack.c.bf16 %v1001, %v1001
        %v1356 = vpack.c.bf16 %v1004, %v1004
        %v1358 = vsel %vm1304, %v1349, 0
        %vm1360 = vcmask 1043456
        %v1362 = vsel %vm1360, %v1353, 0
        %1364 = vmatprep.subr.bf16.mxu0 0
        %1365 = vmatpush1.bf16.msra.mxu0 %v1362
        %1366 = vmatprep.subr.bf16.mxu0 0
        %1367 = vmatpush1.bf16.msra.mxu0 0
        %1368 = vmatprep.subr.bf16.mxu0 0
        %1369 = vmatpush1.bf16.msra.mxu0 0
        %1370 = vmatprep.subr.bf16.mxu0 0
        %1371 = vmatpush1.bf16.msra.mxu0 0
        %1372 = vmatprep.subr.bf16.mxu0 0
        %1373 = vmatpush1.bf16.msra.mxu0 0
        %1374 = vmatprep.subr.bf16.mxu0 0
        %1375 = vmatpush1.bf16.msra.mxu0 0
        %1376 = vmatprep.subr.bf16.mxu0 0
        %1377 = vmatpush1.bf16.msra.mxu0 0
        %1378 = vmatprep.subr.bf16.mxu0 0
        %1379 = vmatpush1.bf16.msra.mxu0 0
        %1380 = vmatprep.subr.bf16.mxu0 0
        %1381 = vmatpush1.bf16.msra.mxu0 0
        %1382 = vmatprep.subr.bf16.mxu0 0
        %1383 = vmatpush1.bf16.msra.mxu0 0
        %1384 = vmatprep.subr.bf16.mxu0 0
        %1385 = vmatpush1.bf16.msra.mxu0 0
        %1386 = vmatprep.subr.bf16.mxu0 0
        %1387 = vmatpush1.bf16.msra.mxu0 0
        %1388 = vmatprep.subr.bf16.mxu0 0
        %1389 = vmatpush1.bf16.msra.mxu0 0
        %1390 = vmatprep.subr.bf16.mxu0 0
        %1391 = vmatpush1.bf16.msra.mxu0 0
        %1392 = vmatprep.subr.bf16.mxu0 0
        %1393 = vmatpush1.bf16.msra.mxu0 0
        %1394 = vmatprep.subr.bf16.mxu0 0
        %1395 = vmatpush1.bf16.msra.mxu0 0
        %1396 = vmatprep.mubr.bf16.mxu0 0
        %1397 = vmatmul.mubr.bf16.gmra.mrb[0].mxu0 %v1358
        %v1398 = vpop.f32.mrb[0].mxu0
        %v1399 = vadd.f32 0.0, %v1398
        %v1400 = vpop.f32.mrb[0].mxu0
        %v1401 = vpop.f32.mrb[0].mxu0
        %v1402 = vpop.f32.mrb[0].mxu0
        %1403 = vdwg.mxu0
        %v1405 = vsel %vm1304, %v1350, 0
        %v1408 = vsel %vm1360, %v1354, 0
        %1410 = vmatprep.subr.bf16.mxu0 0
        %1411 = vmatpush1.bf16.msra.mxu0 %v1408
        %1412 = vmatprep.subr.bf16.mxu0 0
        %1413 = vmatpush1.bf16.msra.mxu0 0
        %1414 = vmatprep.subr.bf16.mxu0 0
        %1415 = vmatpush1.bf16.msra.mxu0 0
        %1416 = vmatprep.subr.bf16.mxu0 0
        %1417 = vmatpush1.bf16.msra.mxu0 0
        %1418 = vmatprep.subr.bf16.mxu0 0
        %1419 = vmatpush1.bf16.msra.mxu0 0
        %1420 = vmatprep.subr.bf16.mxu0 0
        %1421 = vmatpush1.bf16.msra.mxu0 0
        %1422 = vmatprep.subr.bf16.mxu0 0
        %1423 = vmatpush1.bf16.msra.mxu0 0
        %1424 = vmatprep.subr.bf16.mxu0 0
        %1425 = vmatpush1.bf16.msra.mxu0 0
        %1426 = vmatprep.subr.bf16.mxu0 0
        %1427 = vmatpush1.bf16.msra.mxu0 0
        %1428 = vmatprep.subr.bf16.mxu0 0
        %1429 = vmatpush1.bf16.msra.mxu0 0
        %1430 = vmatprep.subr.bf16.mxu0 0
        %1431 = vmatpush1.bf16.msra.mxu0 0
        %1432 = vmatprep.subr.bf16.mxu0 0
        %1433 = vmatpush1.bf16.msra.mxu0 0
        %1434 = vmatprep.subr.bf16.mxu0 0
        %1435 = vmatpush1.bf16.msra.mxu0 0
        %1436 = vmatprep.subr.bf16.mxu0 0
        %1437 = vmatpush1.bf16.msra.mxu0 0
        %1438 = vmatprep.subr.bf16.mxu0 0
        %1439 = vmatpush1.bf16.msra.mxu0 0
        %1440 = vmatprep.subr.bf16.mxu0 0
        %1441 = vmatpush1.bf16.msra.mxu0 0
        %1442 = vmatprep.mubr.bf16.mxu0 0
        %1443 = vmatmul.mubr.bf16.gmra.mrb[0].mxu0 %v1405
        %v1444 = vpop.f32.mrb[0].mxu0
        %v1445 = vadd.f32 0.0, %v1444
        %v1446 = vpop.f32.mrb[0].mxu0
        %v1447 = vpop.f32.mrb[0].mxu0
        %v1448 = vpop.f32.mrb[0].mxu0
        %1449 = vdwg.mxu0
        %v1451 = vsel %vm1304, %v1351, 0
        %v1454 = vsel %vm1360, %v1355, 0
        %1456 = vmatprep.subr.bf16.mxu0 0
        %1457 = vmatpush1.bf16.msra.mxu0 %v1454
        %1458 = vmatprep.subr.bf16.mxu0 0
        %1459 = vmatpush1.bf16.msra.mxu0 0
        %1460 = vmatprep.subr.bf16.mxu0 0
        %1461 = vmatpush1.bf16.msra.mxu0 0
        %1462 = vmatprep.subr.bf16.mxu0 0
        %1463 = vmatpush1.bf16.msra.mxu0 0
        %1464 = vmatprep.subr.bf16.mxu0 0
        %1465 = vmatpush1.bf16.msra.mxu0 0
        %1466 = vmatprep.subr.bf16.mxu0 0
        %1467 = vmatpush1.bf16.msra.mxu0 0
        %1468 = vmatprep.subr.bf16.mxu0 0
        %1469 = vmatpush1.bf16.msra.mxu0 0
        %1470 = vmatprep.subr.bf16.mxu0 0
        %1471 = vmatpush1.bf16.msra.mxu0 0
        %1472 = vmatprep.subr.bf16.mxu0 0
        %1473 = vmatpush1.bf16.msra.mxu0 0
        %1474 = vmatprep.subr.bf16.mxu0 0
        %1475 = vmatpush1.bf16.msra.mxu0 0
        %1476 = vmatprep.subr.bf16.mxu0 0
        %1477 = vmatpush1.bf16.msra.mxu0 0
        %1478 = vmatprep.subr.bf16.mxu0 0
        %1479 = vmatpush1.bf16.msra.mxu0 0
        %1480 = vmatprep.subr.bf16.mxu0 0
        %1481 = vmatpush1.bf16.msra.mxu0 0
        %1482 = vmatprep.subr.bf16.mxu0 0
        %1483 = vmatpush1.bf16.msra.mxu0 0
        %1484 = vmatprep.subr.bf16.mxu0 0
        %1485 = vmatpush1.bf16.msra.mxu0 0
        %1486 = vmatprep.subr.bf16.mxu0 0
        %1487 = vmatpush1.bf16.msra.mxu0 0
        %1488 = vmatprep.mubr.bf16.mxu0 0
        %1489 = vmatmul.mubr.bf16.gmra.mrb[0].mxu0 %v1451
        %v1490 = vpop.f32.mrb[0].mxu0
        %v1491 = vadd.f32 0.0, %v1490
        %v1492 = vpop.f32.mrb[0].mxu0
        %v1493 = vpop.f32.mrb[0].mxu0
        %v1494 = vpop.f32.mrb[0].mxu0
        %1495 = vdwg.mxu0
        %v1497 = vsel %vm1304, %v1352, 0
        %v1500 = vsel %vm1360, %v1356, 0
        %1502 = vmatprep.subr.bf16.mxu0 0
        %1503 = vmatpush1.bf16.msra.mxu0 %v1500
        %1504 = vmatprep.subr.bf16.mxu0 0
        %1505 = vmatpush1.bf16.msra.mxu0 0
        %1506 = vmatprep.subr.bf16.mxu0 0
        %1507 = vmatpush1.bf16.msra.mxu0 0
        %1508 = vmatprep.subr.bf16.mxu0 0
        %1509 = vmatpush1.bf16.msra.mxu0 0
        %1510 = vmatprep.subr.bf16.mxu0 0
        %1511 = vmatpush1.bf16.msra.mxu0 0
        %1512 = vmatprep.subr.bf16.mxu0 0
        %1513 = vmatpush1.bf16.msra.mxu0 0
        %1514 = vmatprep.subr.bf16.mxu0 0
        %1515 = vmatpush1.bf16.msra.mxu0 0
        %1516 = vmatprep.subr.bf16.mxu0 0
        %1517 = vmatpush1.bf16.msra.mxu0 0
        %1518 = vmatprep.subr.bf16.mxu0 0
        %1519 = vmatpush1.bf16.msra.mxu0 0
        %1520 = vmatprep.subr.bf16.mxu0 0
        %1521 = vmatpush1.bf16.msra.mxu0 0
        %1522 = vmatprep.subr.bf16.mxu0 0
        %1523 = vmatpush1.bf16.msra.mxu0 0
        %1524 = vmatprep.subr.bf16.mxu0 0
        %1525 = vmatpush1.bf16.msra.mxu0 0
        %1526 = vmatprep.subr.bf16.mxu0 0
        %1527 = vmatpush1.bf16.msra.mxu0 0
        %1528 = vmatprep.subr.bf16.mxu0 0
        %1529 = vmatpush1.bf16.msra.mxu0 0
        %1530 = vmatprep.subr.bf16.mxu0 0
        %1531 = vmatpush1.bf16.msra.mxu0 0
        %1532 = vmatprep.subr.bf16.mxu0 0
        %1533 = vmatpush1.bf16.msra.mxu0 0
        %1534 = vmatprep.mubr.bf16.mxu0 0
        %1535 = vmatmul.mubr.bf16.gmra.mrb[0].mxu0 %v1497
        %v1536 = vpop.f32.mrb[0].mxu0
        %v1537 = vadd.f32 0.0, %v1536
        %v1538 = vpop.f32.mrb[0].mxu0
        %v1539 = vpop.f32.mrb[0].mxu0
        %v1540 = vpop.f32.mrb[0].mxu0
        %1541 = vdwg.mxu0
        %1543 = vrot.lane.b32.xlu0 %v1445, 32
        %v1544 = vpop.permute.xlu0 %1543
        %1547 = vrot.lane.b32.xlu0 %v1491, 64
        %v1548 = vpop.permute.xlu0 %1547
        %1551 = vrot.lane.b32.xlu0 %v1537, 96
        %v1552 = vpop.permute.xlu0 %1551
        %v1554 = vsel %vm1111, %v1399, %v1544
        %vm1555 = vcmask 523264
        %v1556 = vsel %vm1555, %v1554, %v1548
        %vm1557 = vcmask 785408
        %v1558 = vsel %vm1557, %v1556, %v1552
        %v1559 = vand.u32 2147483647, %v1558
        %1560 = vmax.xlane.f32.xlu0 %v1559
        %v1561 = vpop.xlane.xlu0 %1560
        %v1562 = vmax.f32 %v1561, 1e-05
        %v1563 = vrcp.pop %v1562
        %v1564 = vmul.f32 127.0, %v1563
        %v1565 = vmul.f32 %v1558, %v1564
        %v1566 = vround.ne.pseudo %v1565
        %v1567 = vmax.f32 %v1566, -128.0
        %v1568 = vmin.f32 %v1567, 127.0
        %v1569 = vpack.c.bf16 %v1568, %v1568
        %v1570 = vmul.f32 %v1562, 0.007874016
        %v1571 = vld [vmem:[#allocation11] sm:$0xf]
        %v1572 = vld [vmem:[#allocation11 + $0x4] sm:$0xf]
        %v1573 = vld [vmem:[#allocation11 + $0x8] sm:$0xf]
        %v1574 = vld [vmem:[#allocation11 + $0xc] sm:$0xf]
        %v1575 = vld [vmem:[#allocation11 + $0x10] sm:$0xf]
        %v1576 = vld [vmem:[#allocation11 + $0x14] sm:$0xf]
        %v1577 = vld [vmem:[#allocation11 + $0x18] sm:$0xf]
        %v1578 = vld [vmem:[#allocation11 + $0x1c] sm:$0xf]
        %v1579 = vld [vmem:[#allocation11 + $0x20] sm:$0xf]
        %v1580 = vld [vmem:[#allocation11 + $0x24] sm:$0xf]
        %v1581 = vld [vmem:[#allocation11 + $0x28] sm:$0xf]
        %v1582 = vld [vmem:[#allocation11 + $0x2c] sm:$0xf]
        %v1583 = vld [vmem:[#allocation11 + $0x30] sm:$0xf]
        %v1584 = vld [vmem:[#allocation11 + $0x34] sm:$0xf]
        %v1585 = vld [vmem:[#allocation11 + $0x38] sm:$0xf]
        %v1586 = vld [vmem:[#allocation11 + $0x3c] sm:$0xf]
        %v1603 = vunpack.c.l.b16 %v1571
        %v1604 = vunpack.c.l.b16 %v1572
        %v1605 = vunpack.c.l.b16 %v1573
        %v1606 = vunpack.c.l.b16 %v1574
        %v1607 = vunpack.c.l.b16 %v1575
        %v1608 = vunpack.c.l.b16 %v1576
        %v1609 = vunpack.c.l.b16 %v1577
        %v1610 = vunpack.c.l.b16 %v1578
        %v1611 = vunpack.c.l.b16 %v1579
        %v1612 = vunpack.c.l.b16 %v1580
        %v1613 = vunpack.c.l.b16 %v1581
        %v1614 = vunpack.c.l.b16 %v1582
        %v1615 = vunpack.c.l.b16 %v1583
        %v1616 = vunpack.c.l.b16 %v1584
        %v1617 = vunpack.c.l.b16 %v1585
        %v1618 = vunpack.c.l.b16 %v1586
        %v1619 = vpack.c.b16 %v1604, %v1603
        %v1620 = vpack.c.b16 %v1606, %v1605
        %v1621 = vpack.c.b16 %v1608, %v1607
        %v1622 = vpack.c.b16 %v1610, %v1609
        %v1623 = vpack.c.b16 %v1612, %v1611
        %v1624 = vpack.c.b16 %v1614, %v1613
        %v1625 = vpack.c.b16 %v1616, %v1615
        %v1626 = vpack.c.b16 %v1618, %v1617
        %1635 = vmatprep.subr.bf16.mxu0 0
        %1636 = vmatpush1.bf16.msra.mxu0 %v1619
        %1637 = vmatprep.subr.bf16.mxu0 0
        %1638 = vmatpush1.bf16.msra.mxu0 %v1620
        %1639 = vmatprep.subr.bf16.mxu0 0
        %1640 = vmatpush1.bf16.msra.mxu0 %v1621
        %1641 = vmatprep.subr.bf16.mxu0 0
        %1642 = vmatpush1.bf16.msra.mxu0 %v1622
        %1643 = vmatprep.subr.bf16.mxu0 0
        %1644 = vmatpush1.bf16.msra.mxu0 %v1623
        %1645 = vmatprep.subr.bf16.mxu0 0
        %1646 = vmatpush1.bf16.msra.mxu0 %v1624
        %1647 = vmatprep.subr.bf16.mxu0 0
        %1648 = vmatpush1.bf16.msra.mxu0 %v1625
        %1649 = vmatprep.subr.bf16.mxu0 0
        %1650 = vmatpush1.bf16.msra.mxu0 %v1626
        %1651 = vmatprep.subr.bf16.mxu0 0
        %1652 = vmatpush1.bf16.msra.mxu0 0
        %1653 = vmatprep.subr.bf16.mxu0 0
        %1654 = vmatpush1.bf16.msra.mxu0 0
        %1655 = vmatprep.subr.bf16.mxu0 0
        %1656 = vmatpush1.bf16.msra.mxu0 0
        %1657 = vmatprep.subr.bf16.mxu0 0
        %1658 = vmatpush1.bf16.msra.mxu0 0
        %1659 = vmatprep.subr.bf16.mxu0 0
        %1660 = vmatpush1.bf16.msra.mxu0 0
        %1661 = vmatprep.subr.bf16.mxu0 0
        %1662 = vmatpush1.bf16.msra.mxu0 0
        %1663 = vmatprep.subr.bf16.mxu0 0
        %1664 = vmatpush1.bf16.msra.mxu0 0
        %1665 = vmatprep.subr.bf16.mxu0 0
        %1666 = vmatpush1.bf16.msra.mxu0 0
        %1667 = vmatprep.mubr.bf16.mxu0 0
        %1668 = vmatmul.mubr.bf16.gmra.mrb[0].mxu0 %v1569
        %v1669 = vpop.f32.mrb[0].mxu0
        %v1670 = vadd.f32 0.0, %v1669
        %v1671 = vpop.f32.mrb[0].mxu0
        %v1672 = vpop.f32.mrb[0].mxu0
        %v1673 = vpop.f32.mrb[0].mxu0
        %1674 = vdwg.mxu0
        %v1675 = vlaneseq
        %v1676 = vshrl.u32 %v1675, 7
        %v1677 = vsub.s32 3, %v1676
        %v1678 = vrot.slane %v602, %v1677
        %v1679 = vmul.f32 %v1570, %v1678
        %1681 = vset.pattern.permute.xlu0 0
        %1682 = vperm.xlu0 %1681, %v1679
        %v1683 = vpop.permute.xlu0 %1682
        %v1685 = vmul.f32 %v1670, %v1683
        %v1686 = vadd.f32 %v598, %v1685
        %v1687 = vld [vmem:[%s5] sm:$0x1]
        %v1688 = vmul.f32 %v1686, %v1686
        %1689 = vadd.xlane.f32.xlu0 %v1688
        %v1690 = vpop.xlane.xlu0 %1689
        %v1691 = vmul.f32 %v1690, %v607
        %v1692 = vadd.f32 %v1691, 1e-06
        %v1693 = vrsqrt.pop %v1692
        %v1694 = vmul.f32 %v1686, %v1693
        %v1696 = vlaneseq
        %v1697 = vshrl.u32 %v1696, 7
        %v1698 = vsub.s32 0, %v1697
        %v1699 = vrot.slane %v1687, %v1698
        %v1701 = vmul.f32 %v1694, %v1699
        %v1702 = vand.u32 2147483647, %v1701
        %1703 = vmax.xlane.f32.xlu0 %v1702
        %v1704 = vpop.xlane.xlu0 %1703
        %v1705 = vmax.f32 %v1704, 1e-05
        %v1706 = vrcp.pop %v1705
        %v1707 = vmul.f32 127.0, %v1706
        %v1708 = vmul.f32 %v1701, %v1707
        %v1709 = vround.ne.pseudo %v1708
        %v1710 = vmax.f32 %v1709, -128.0
        %v1711 = vmin.f32 %v1710, 127.0
        %v1712 = vpack.c.bf16 %v1711, %v1711
        %v1713 = vmul.f32 %v1705, 0.007874016
        %v1714 = vld [vmem:[#allocation13] sm:$0xff]
        %v1715 = vld [vmem:[#allocation13 + $0x8] sm:$0xff]
        %v1716 = vld [vmem:[#allocation13 + $0x10] sm:$0xff]
        %v1717 = vld [vmem:[#allocation13 + $0x18] sm:$0xff]
        %v1718 = vld [vmem:[#allocation13 + $0x20] sm:$0xff]
        %v1719 = vld [vmem:[#allocation13 + $0x28] sm:$0xff]
        %v1720 = vld [vmem:[#allocation13 + $0x30] sm:$0xff]
        %v1721 = vld [vmem:[#allocation13 + $0x38] sm:$0xff]
        %v1722 = vld [vmem:[#allocation13 + $0x40] sm:$0xff]
        %v1723 = vld [vmem:[#allocation13 + $0x48] sm:$0xff]
        %v1724 = vld [vmem:[#allocation13 + $0x50] sm:$0xff]
        %v1725 = vld [vmem:[#allocation13 + $0x58] sm:$0xff]
        %v1726 = vld [vmem:[#allocation13 + $0x60] sm:$0xff]
        %v1727 = vld [vmem:[#allocation13 + $0x68] sm:$0xff]
        %v1728 = vld [vmem:[#allocation13 + $0x70] sm:$0xff]
        %v1729 = vld [vmem:[#allocation13 + $0x78] sm:$0xff]
        %v1746 = vunpack.c.l.b16 %v1714
        %v1747 = vunpack.c.h.b16 %v1714
        %v1748 = vunpack.c.l.b16 %v1715
        %v1749 = vunpack.c.h.b16 %v1715
        %v1750 = vunpack.c.l.b16 %v1716
        %v1751 = vunpack.c.h.b16 %v1716
        %v1752 = vunpack.c.l.b16 %v1717
        %v1753 = vunpack.c.h.b16 %v1717
        %v1754 = vunpack.c.l.b16 %v1718
        %v1755 = vunpack.c.h.b16 %v1718
        %v1756 = vunpack.c.l.b16 %v1719
        %v1757 = vunpack.c.h.b16 %v1719
        %v1758 = vunpack.c.l.b16 %v1720
        %v1759 = vunpack.c.h.b16 %v1720
        %v1760 = vunpack.c.l.b16 %v1721
        %v1761 = vunpack.c.h.b16 %v1721
        %v1762 = vunpack.c.l.b16 %v1722
        %v1763 = vunpack.c.h.b16 %v1722
        %v1764 = vunpack.c.l.b16 %v1723
        %v1765 = vunpack.c.h.b16 %v1723
        %v1766 = vunpack.c.l.b16 %v1724
        %v1767 = vunpack.c.h.b16 %v1724
        %v1768 = vunpack.c.l.b16 %v1725
        %v1769 = vunpack.c.h.b16 %v1725
        %v1770 = vunpack.c.l.b16 %v1726
        %v1771 = vunpack.c.h.b16 %v1726
        %v1772 = vunpack.c.l.b16 %v1727
        %v1773 = vunpack.c.h.b16 %v1727
        %v1774 = vunpack.c.l.b16 %v1728
        %v1775 = vunpack.c.h.b16 %v1728
        %v1776 = vunpack.c.l.b16 %v1729
        %v1777 = vunpack.c.h.b16 %v1729
        %v1778 = vpack.c.b16 %v1748, %v1746
        %v1779 = vpack.c.b16 %v1749, %v1747
        %v1780 = vpack.c.b16 %v1752, %v1750
        %v1781 = vpack.c.b16 %v1753, %v1751
        %v1782 = vpack.c.b16 %v1756, %v1754
        %v1783 = vpack.c.b16 %v1757, %v1755
        %v1784 = vpack.c.b16 %v1760, %v1758
        %v1785 = vpack.c.b16 %v1761, %v1759
        %v1786 = vpack.c.b16 %v1764, %v1762
        %v1787 = vpack.c.b16 %v1765, %v1763
        %v1788 = vpack.c.b16 %v1768, %v1766
        %v1789 = vpack.c.b16 %v1769, %v1767
        %v1790 = vpack.c.b16 %v1772, %v1770
        %v1791 = vpack.c.b16 %v1773, %v1771
        %v1792 = vpack.c.b16 %v1776, %v1774
        %v1793 = vpack.c.b16 %v1777, %v1775
        %1810 = vmatprep.subr.bf16.mxu0 %v1779
        %1811 = vmatpush1.bf16.msra.mxu0 %v1778
        %1812 = vmatprep.subr.bf16.mxu0 %v1781
        %1813 = vmatpush1.bf16.msra.mxu0 %v1780
        %1814 = vmatprep.subr.bf16.mxu0 %v1783
        %1815 = vmatpush1.bf16.msra.mxu0 %v1782
        %1816 = vmatprep.subr.bf16.mxu0 %v1785
        %1817 = vmatpush1.bf16.msra.mxu0 %v1784
        %1818 = vmatprep.subr.bf16.mxu0 %v1787
        %1819 = vmatpush1.bf16.msra.mxu0 %v1786
        %1820 = vmatprep.subr.bf16.mxu0 %v1789
        %1821 = vmatpush1.bf16.msra.mxu0 %v1788
        %1822 = vmatprep.subr.bf16.mxu0 %v1791
        %1823 = vmatpush1.bf16.msra.mxu0 %v1790
        %1824 = vmatprep.subr.bf16.mxu0 %v1793
        %1825 = vmatpush1.bf16.msra.mxu0 %v1792
        %1826 = vmatprep.subr.bf16.mxu0 0
        %1827 = vmatpush1.bf16.msra.mxu0 0
        %1828 = vmatprep.subr.bf16.mxu0 0
        %1829 = vmatpush1.bf16.msra.mxu0 0
        %1830 = vmatprep.subr.bf16.mxu0 0
        %1831 = vmatpush1.bf16.msra.mxu0 0
        %1832 = vmatprep.subr.bf16.mxu0 0
        %1833 = vmatpush1.bf16.msra.mxu0 0
        %1834 = vmatprep.subr.bf16.mxu0 0
        %1835 = vmatpush1.bf16.msra.mxu0 0
        %1836 = vmatprep.subr.bf16.mxu0 0
        %1837 = vmatpush1.bf16.msra.mxu0 0
        %1838 = vmatprep.subr.bf16.mxu0 0
        %1839 = vmatpush1.bf16.msra.mxu0 0
        %1840 = vmatprep.subr.bf16.mxu0 0
        %1841 = vmatpush1.bf16.msra.mxu0 0
        %1842 = vmatprep.mubr.bf16.mxu0 0
        %1843 = vmatmul.mubr.bf16.gmra.mrb[0].mxu0 %v1712
        %v1844 = vpop.f32.mrb[0].mxu0
        %v1845 = vadd.f32 0.0, %v1844
        %v1846 = vpop.f32.mrb[0].mxu0
        %v1847 = vadd.f32 0.0, %v1846
        %v1848 = vpop.f32.mrb[0].mxu0
        %v1849 = vpop.f32.mrb[0].mxu0
        %1850 = vdwg.mxu0
        %v1851 = vlaneseq
        %v1852 = vshrl.u32 %v1851, 7
        %v1853 = vsub.s32 4, %v1852
        %v1854 = vrot.slane %v602, %v1853
        %v1855 = vmul.f32 %v1713, %v1854
        %1857 = vset.pattern.permute.xlu0 0
        %1858 = vperm.xlu0 %1857, %v1855
        %v1859 = vpop.permute.xlu0 %1858
        %v1861 = vmul.f32 %v1845, %v1859
        %v1862 = vmul.f32 %v1847, %v1859
        %v1863 = vld [vmem:[#allocation14] sm:$0xff]
        %v1864 = vld [vmem:[#allocation14 + $0x8] sm:$0xff]
        %v1865 = vld [vmem:[#allocation14 + $0x10] sm:$0xff]
        %v1866 = vld [vmem:[#allocation14 + $0x18] sm:$0xff]
        %v1867 = vld [vmem:[#allocation14 + $0x20] sm:$0xff]
        %v1868 = vld [vmem:[#allocation14 + $0x28] sm:$0xff]
        %v1869 = vld [vmem:[#allocation14 + $0x30] sm:$0xff]
        %v1870 = vld [vmem:[#allocation14 + $0x38] sm:$0xff]
        %v1871 = vld [vmem:[#allocation14 + $0x40] sm:$0xff]
        %v1872 = vld [vmem:[#allocation14 + $0x48] sm:$0xff]
        %v1873 = vld [vmem:[#allocation14 + $0x50] sm:$0xff]
        %v1874 = vld [vmem:[#allocation14 + $0x58] sm:$0xff]
        %v1875 = vld [vmem:[#allocation14 + $0x60] sm:$0xff]
        %v1876 = vld [vmem:[#allocation14 + $0x68] sm:$0xff]
        %v1877 = vld [vmem:[#allocation14 + $0x70] sm:$0xff]
        %v1878 = vld [vmem:[#allocation14 + $0x78] sm:$0xff]
        %v1895 = vunpack.c.l.b16 %v1863
        %v1896 = vunpack.c.h.b16 %v1863
        %v1897 = vunpack.c.l.b16 %v1864
        %v1898 = vunpack.c.h.b16 %v1864
        %v1899 = vunpack.c.l.b16 %v1865
        %v1900 = vunpack.c.h.b16 %v1865
        %v1901 = vunpack.c.l.b16 %v1866
        %v1902 = vunpack.c.h.b16 %v1866
        %v1903 = vunpack.c.l.b16 %v1867
        %v1904 = vunpack.c.h.b16 %v1867
        %v1905 = vunpack.c.l.b16 %v1868
        %v1906 = vunpack.c.h.b16 %v1868
        %v1907 = vunpack.c.l.b16 %v1869
        %v1908 = vunpack.c.h.b16 %v1869
        %v1909 = vunpack.c.l.b16 %v1870
        %v1910 = vunpack.c.h.b16 %v1870
        %v1911 = vunpack.c.l.b16 %v1871
        %v1912 = vunpack.c.h.b16 %v1871
        %v1913 = vunpack.c.l.b16 %v1872
        %v1914 = vunpack.c.h.b16 %v1872
        %v1915 = vunpack.c.l.b16 %v1873
        %v1916 = vunpack.c.h.b16 %v1873
        %v1917 = vunpack.c.l.b16 %v1874
        %v1918 = vunpack.c.h.b16 %v1874
        %v1919 = vunpack.c.l.b16 %v1875
        %v1920 = vunpack.c.h.b16 %v1875
        %v1921 = vunpack.c.l.b16 %v1876
        %v1922 = vunpack.c.h.b16 %v1876
        %v1923 = vunpack.c.l.b16 %v1877
        %v1924 = vunpack.c.h.b16 %v1877
        %v1925 = vunpack.c.l.b16 %v1878
        %v1926 = vunpack.c.h.b16 %v1878
        %v1927 = vpack.c.b16 %v1897, %v1895
        %v1928 = vpack.c.b16 %v1898, %v1896
        %v1929 = vpack.c.b16 %v1901, %v1899
        %v1930 = vpack.c.b16 %v1902, %v1900
        %v1931 = vpack.c.b16 %v1905, %v1903
        %v1932 = vpack.c.b16 %v1906, %v1904
        %v1933 = vpack.c.b16 %v1909, %v1907
        %v1934 = vpack.c.b16 %v1910, %v1908
        %v1935 = vpack.c.b16 %v1913, %v1911
        %v1936 = vpack.c.b16 %v1914, %v1912
        %v1937 = vpack.c.b16 %v1917, %v1915
        %v1938 = vpack.c.b16 %v1918, %v1916
        %v1939 = vpack.c.b16 %v1921, %v1919
        %v1940 = vpack.c.b16 %v1922, %v1920
        %v1941 = vpack.c.b16 %v1925, %v1923
        %v1942 = vpack.c.b16 %v1926, %v1924
        %1959 = vmatprep.subr.bf16.mxu0 %v1928
        %1960 = vmatpush1.bf16.msra.mxu0 %v1927
        %1961 = vmatprep.subr.bf16.mxu0 %v1930
        %1962 = vmatpush1.bf16.msra.mxu0 %v1929
        %1963 = vmatprep.subr.bf16.mxu0 %v1932
        %1964 = vmatpush1.bf16.msra.mxu0 %v1931
        %1965 = vmatprep.subr.bf16.mxu0 %v1934
        %1966 = vmatpush1.bf16.msra.mxu0 %v1933
        %1967 = vmatprep.subr.bf16.mxu0 %v1936
        %1968 = vmatpush1.bf16.msra.mxu0 %v1935
        %1969 = vmatprep.subr.bf16.mxu0 %v1938
        %1970 = vmatpush1.bf16.msra.mxu0 %v1937
        %1971 = vmatprep.subr.bf16.mxu0 %v1940
        %1972 = vmatpush1.bf16.msra.mxu0 %v1939
        %1973 = vmatprep.subr.bf16.mxu0 %v1942
        %1974 = vmatpush1.bf16.msra.mxu0 %v1941
        %1975 = vmatprep.subr.bf16.mxu0 0
        %1976 = vmatpush1.bf16.msra.mxu0 0
        %1977 = vmatprep.subr.bf16.mxu0 0
        %1978 = vmatpush1.bf16.msra.mxu0 0
        %1979 = vmatprep.subr.bf16.mxu0 0
        %1980 = vmatpush1.bf16.msra.mxu0 0
        %1981 = vmatprep.subr.bf16.mxu0 0
        %1982 = vmatpush1.bf16.msra.mxu0 0
        %1983 = vmatprep.subr.bf16.mxu0 0
        %1984 = vmatpush1.bf16.msra.mxu0 0
        %1985 = vmatprep.subr.bf16.mxu0 0
        %1986 = vmatpush1.bf16.msra.mxu0 0
        %1987 = vmatprep.subr.bf16.mxu0 0
        %1988 = vmatpush1.bf16.msra.mxu0 0
        %1989 = vmatprep.subr.bf16.mxu0 0
        %1990 = vmatpush1.bf16.msra.mxu0 0
        %1991 = vmatprep.mubr.bf16.mxu0 0
        %1992 = vmatmul.mubr.bf16.gmra.mrb[0].mxu0 %v1712
        %v1993 = vpop.f32.mrb[0].mxu0
        %v1994 = vadd.f32 0.0, %v1993
        %v1995 = vpop.f32.mrb[0].mxu0
        %v1996 = vadd.f32 0.0, %v1995
        %v1997 = vpop.f32.mrb[0].mxu0
        %v1998 = vpop.f32.mrb[0].mxu0
        %1999 = vdwg.mxu0
        %v2000 = vlaneseq
        %v2001 = vshrl.u32 %v2000, 7
        %v2002 = vsub.s32 5, %v2001
        %v2003 = vrot.slane %v602, %v2002
        %v2004 = vmul.f32 %v1713, %v2003
        %2006 = vset.pattern.permute.xlu0 0
        %2007 = vperm.xlu0 %2006, %v2004
        %v2008 = vpop.permute.xlu0 %2007
        %v2010 = vmul.f32 %v1994, %v2008
        %v2011 = vmul.f32 %v1996, %v2008
        %v2012 = vxor.u32 %v1861, 2147483648
        %v2013 = vxor.u32 %v1862, 2147483648
        %v2014 = vmul.f32 %v2012, 1.442695
        %v2015 = vpow.pop %v2014
        %v2016 = vmul.f32 %v2013, 1.442695
        %v2017 = vpow.pop %v2016
        %v2018 = vadd.f32 %v2015, 1.0
        %v2019 = vadd.f32 %v2017, 1.0
        %v2020 = vrcp.pop %v2018
        %v2021 = vmul.f32 1.0, %v2020
        %v2022 = vrcp.pop %v2019
        %v2023 = vmul.f32 1.0, %v2022
        %v2024 = vmul.f32 %v1861, %v2021
        %v2025 = vmul.f32 %v1862, %v2023
        %v2026 = vmul.f32 %v2024, %v2010
        %v2027 = vmul.f32 %v2025, %v2011
        %v2028 = vand.u32 2147483647, %v2026
        %v2029 = vand.u32 2147483647, %v2027
        %v2030 = vmax.f32 %v2028, %v2029
        %2031 = vmax.xlane.f32.xlu0 %v2030
        %v2032 = vpop.xlane.xlu0 %2031
        %v2033 = vmax.f32 %v2032, 1e-05
        %v2034 = vrcp.pop %v2033
        %v2035 = vmul.f32 127.0, %v2034
        %v2036 = vmul.f32 %v2026, %v2035
        %v2037 = vmul.f32 %v2027, %v2035
        %v2038 = vround.ne.pseudo %v2036
        %v2039 = vround.ne.pseudo %v2037
        %v2040 = vmax.f32 %v2038, -128.0
        %v2041 = vmax.f32 %v2039, -128.0
        %v2042 = vmin.f32 %v2040, 127.0
        %v2043 = vmin.f32 %v2041, 127.0
        %v2044 = vpack.c.bf16 %v2042, %v2042
        %v2045 = vpack.c.bf16 %v2043, %v2043
        %v2046 = vmul.f32 %v2033, 0.007874016
        %v2047 = vld [vmem:[#allocation16] sm:$0xf]
        %v2048 = vld [vmem:[#allocation16 + $0x4] sm:$0xf]
        %v2049 = vld [vmem:[#allocation16 + $0x8] sm:$0xf]
        %v2050 = vld [vmem:[#allocation16 + $0xc] sm:$0xf]
        %v2051 = vld [vmem:[#allocation16 + $0x10] sm:$0xf]
        %v2052 = vld [vmem:[#allocation16 + $0x14] sm:$0xf]
        %v2053 = vld [vmem:[#allocation16 + $0x18] sm:$0xf]
        %v2054 = vld [vmem:[#allocation16 + $0x1c] sm:$0xf]
        %v2055 = vld [vmem:[#allocation16 + $0x20] sm:$0xf]
        %v2056 = vld [vmem:[#allocation16 + $0x24] sm:$0xf]
        %v2057 = vld [vmem:[#allocation16 + $0x28] sm:$0xf]
        %v2058 = vld [vmem:[#allocation16 + $0x2c] sm:$0xf]
        %v2059 = vld [vmem:[#allocation16 + $0x30] sm:$0xf]
        %v2060 = vld [vmem:[#allocation16 + $0x34] sm:$0xf]
        %v2061 = vld [vmem:[#allocation16 + $0x38] sm:$0xf]
        %v2062 = vld [vmem:[#allocation16 + $0x3c] sm:$0xf]
        %v2063 = vld [vmem:[#allocation16 + $0x40] sm:$0xf]
        %v2064 = vld [vmem:[#allocation16 + $0x44] sm:$0xf]
        %v2065 = vld [vmem:[#allocation16 + $0x48] sm:$0xf]
        %v2066 = vld [vmem:[#allocation16 + $0x4c] sm:$0xf]
        %v2067 = vld [vmem:[#allocation16 + $0x50] sm:$0xf]
        %v2068 = vld [vmem:[#allocation16 + $0x54] sm:$0xf]
        %v2069 = vld [vmem:[#allocation16 + $0x58] sm:$0xf]
        %v2070 = vld [vmem:[#allocation16 + $0x5c] sm:$0xf]
        %v2071 = vld [vmem:[#allocation16 + $0x60] sm:$0xf]
        %v2072 = vld [vmem:[#allocation16 + $0x64] sm:$0xf]
        %v2073 = vld [vmem:[#allocation16 + $0x68] sm:$0xf]
        %v2074 = vld [vmem:[#allocation16 + $0x6c] sm:$0xf]
        %v2075 = vld [vmem:[#allocation16 + $0x70] sm:$0xf]
        %v2076 = vld [vmem:[#allocation16 + $0x74] sm:$0xf]
        %v2077 = vld [vmem:[#allocation16 + $0x78] sm:$0xf]
        %v2078 = vld [vmem:[#allocation16 + $0x7c] sm:$0xf]
        %v2111 = vunpack.c.l.b16 %v2047
        %v2112 = vunpack.c.l.b16 %v2048
        %v2113 = vunpack.c.l.b16 %v2049
        %v2114 = vunpack.c.l.b16 %v2050
        %v2115 = vunpack.c.l.b16 %v2051
        %v2116 = vunpack.c.l.b16 %v2052
        %v2117 = vunpack.c.l.b16 %v2053
        %v2118 = vunpack.c.l.b16 %v2054
        %v2119 = vunpack.c.l.b16 %v2055
        %v2120 = vunpack.c.l.b16 %v2056
        %v2121 = vunpack.c.l.b16 %v2057
        %v2122 = vunpack.c.l.b16 %v2058
        %v2123 = vunpack.c.l.b16 %v2059
        %v2124 = vunpack.c.l.b16 %v2060
        %v2125 = vunpack.c.l.b16 %v2061
        %v2126 = vunpack.c.l.b16 %v2062
        %v2127 = vunpack.c.l.b16 %v2063
        %v2128 = vunpack.c.l.b16 %v2064
        %v2129 = vunpack.c.l.b16 %v2065
        %v2130 = vunpack.c.l.b16 %v2066
        %v2131 = vunpack.c.l.b16 %v2067
        %v2132 = vunpack.c.l.b16 %v2068
        %v2133 = vunpack.c.l.b16 %v2069
        %v2134 = vunpack.c.l.b16 %v2070
        %v2135 = vunpack.c.l.b16 %v2071
        %v2136 = vunpack.c.l.b16 %v2072
        %v2137 = vunpack.c.l.b16 %v2073
        %v2138 = vunpack.c.l.b16 %v2074
        %v2139 = vunpack.c.l.b16 %v2075
        %v2140 = vunpack.c.l.b16 %v2076
        %v2141 = vunpack.c.l.b16 %v2077
        %v2142 = vunpack.c.l.b16 %v2078
        %v2143 = vpack.c.b16 %v2112, %v2111
        %v2144 = vpack.c.b16 %v2114, %v2113
        %v2145 = vpack.c.b16 %v2116, %v2115
        %v2146 = vpack.c.b16 %v2118, %v2117
        %v2147 = vpack.c.b16 %v2120, %v2119
        %v2148 = vpack.c.b16 %v2122, %v2121
        %v2149 = vpack.c.b16 %v2124, %v2123
        %v2150 = vpack.c.b16 %v2126, %v2125
        %v2151 = vpack.c.b16 %v2128, %v2127
        %v2152 = vpack.c.b16 %v2130, %v2129
        %v2153 = vpack.c.b16 %v2132, %v2131
        %v2154 = vpack.c.b16 %v2134, %v2133
        %v2155 = vpack.c.b16 %v2136, %v2135
        %v2156 = vpack.c.b16 %v2138, %v2137
        %v2157 = vpack.c.b16 %v2140, %v2139
        %v2158 = vpack.c.b16 %v2142, %v2141
        %2175 = vmatprep.subr.bf16.mxu0 0
        %2176 = vmatpush1.bf16.msra.mxu0 %v2143
        %2177 = vmatprep.subr.bf16.mxu0 0
        %2178 = vmatpush1.bf16.msra.mxu0 %v2144
        %2179 = vmatprep.subr.bf16.mxu0 0
        %2180 = vmatpush1.bf16.msra.mxu0 %v2145
        %2181 = vmatprep.subr.bf16.mxu0 0
        %2182 = vmatpush1.bf16.msra.mxu0 %v2146
        %2183 = vmatprep.subr.bf16.mxu0 0
        %2184 = vmatpush1.bf16.msra.mxu0 %v2147
        %2185 = vmatprep.subr.bf16.mxu0 0
        %2186 = vmatpush1.bf16.msra.mxu0 %v2148
        %2187 = vmatprep.subr.bf16.mxu0 0
        %2188 = vmatpush1.bf16.msra.mxu0 %v2149
        %2189 = vmatprep.subr.bf16.mxu0 0
        %2190 = vmatpush1.bf16.msra.mxu0 %v2150
        %2191 = vmatprep.subr.bf16.mxu0 0
        %2192 = vmatpush1.bf16.msra.mxu0 %v2151
        %2193 = vmatprep.subr.bf16.mxu0 0
        %2194 = vmatpush1.bf16.msra.mxu0 %v2152
        %2195 = vmatprep.subr.bf16.mxu0 0
        %2196 = vmatpush1.bf16.msra.mxu0 %v2153
        %2197 = vmatprep.subr.bf16.mxu0 0
        %2198 = vmatpush1.bf16.msra.mxu0 %v2154
        %2199 = vmatprep.subr.bf16.mxu0 0
        %2200 = vmatpush1.bf16.msra.mxu0 %v2155
        %2201 = vmatprep.subr.bf16.mxu0 0
        %2202 = vmatpush1.bf16.msra.mxu0 %v2156
        %2203 = vmatprep.subr.bf16.mxu0 0
        %2204 = vmatpush1.bf16.msra.mxu0 %v2157
        %2205 = vmatprep.subr.bf16.mxu0 0
        %2206 = vmatpush1.bf16.msra.mxu0 %v2158
        %2207 = vmatprep.mubr.bf16.mxu0 %v2045
        %2208 = vmatmul.mubr.bf16.gmra.mrb[0].mxu0 %v2044
        %v2209 = vpop.f32.mrb[0].mxu0
        %v2210 = vadd.f32 0.0, %v2209
        %v2211 = vpop.f32.mrb[0].mxu0
        %v2212 = vpop.f32.mrb[0].mxu0
        %v2213 = vpop.f32.mrb[0].mxu0
        %2214 = vdwg.mxu0
        %v2215 = vlaneseq
        %v2216 = vshrl.u32 %v2215, 7
        %v2217 = vsub.s32 6, %v2216
        %v2218 = vrot.slane %v602, %v2217
        %v2219 = vmul.f32 %v2046, %v2218
        %2221 = vset.pattern.permute.xlu0 0
        %2222 = vperm.xlu0 %2221, %v2219
        %v2223 = vpop.permute.xlu0 %2222
        %v2225 = vmul.f32 %v2210, %v2223
        %v2226 = vadd.f32 %v1686, %v2225
        %2227 = vst [vmem:[%s596] sm:$0xff] %v2226
        %s2228 = sand.u32 %s342, 1
        %s2229 = scalar_lea.sflag [#allocation4], %s2228
        %s2230 = sand.u32 %s342, 1
        %s2231 = smul.addr %s2230, 8
        %s2232 = scalar_lea.vmem [#allocation17], %s2231
        // Predicated region
        $region113: #{tpu_custom_call.1} parent=75 // pred_check
          %p2233 = pneg %p352
        $region114: #{tpu_custom_call.1} parent=75 // pred_check_branch
          %2235 = sbr.rel (%p2233) target = $region116
        $region115: #{tpu_custom_call.1} parent=75 // pred_region
          %s2237 = ssub.s32 128, 128
          %2238 = vsyncadd %s2229, %s2237
          %s2239 = smul.addr %s35, 128
          %s2240 = scalar_lea.hbm %s14, %s2239
          %s2242 = sshll.u32 %s2232, 4
          %s2243 = int_to_ptr.vmem [resolvable:$true] %s2242
          %2245 = dma.vmem_to_hbm [thread:$0]  %s2243, 128, %s2240, %s2229
        $region116: #{tpu_custom_call.1} parent=75 // pred_fallthru
          _
      $region76: #{tpu_custom_call.1} parent=5 // pred_fallthru
        _
      %p2246 = scmp.le.s32.totalorder 2, %s30
      // Predicated region
      $region117: #{tpu_custom_call.1} parent=5 // pred_check
        %p2247 = pneg %p2246
      $region118: #{tpu_custom_call.1} parent=5 // pred_check_branch
        %2249 = sbr.rel (%p2247) target = $region120
      $region119: #{tpu_custom_call.1} parent=5 // pred_region
        %s2250 = ssub.s32 %s30, 2
        // Predicated region
        $region121: #{tpu_custom_call.1} parent=119 // pred_check
          %p2251 = pneg %p358
        $region122: #{tpu_custom_call.1} parent=119 // pred_check_branch
          %2253 = sbr.rel (%p2251) target = $region124
        $region123: #{tpu_custom_call.1} parent=119 // pred_region
          %s2254 = sand.u32 %s343, 1
          %s2255 = scalar_lea.sflag [#allocation4], %s2254
          %s2256 = sand.u32 %s343, 1
          %s2257 = smul.addr %s2256, 8
          %s2258 = scalar_lea.vmem [#allocation17], %s2257
          %2259 = dma.done %s2255, 128
        $region124: #{tpu_custom_call.1} parent=119 // pred_fallthru
          _
      $region120: #{tpu_custom_call.1} parent=5 // pred_fallthru
        _
    $region6: #{tpu_custom_call.1} parent=1 // loop_footer
      %s34 = sadd.s32 1, %s30
    $region7: #{tpu_custom_call.1} parent=1 // loop_footer_branch
      %29 = sbr.rel target = $region3
    $region8: #{tpu_custom_call.1} parent=1 // loop_exit
      _
    %2260 = vsyncpa [#allocation3], 1
    %s2261 = scalar_lea.sflag [#allocation3], 1
    %2262 = vsyncpa %s2261, 1
    %2263 = vsyncpa [#allocation6], 1
    %2264 = vsyncpa [#allocation9], 1
    %2265 = vsyncpa [#allocation12], 1
    %2266 = vsyncpa [#allocation15], 1
    %2267 = vsyncpa [#allocation4], 1
    %s2268 = scalar_lea.sflag [#allocation4], 1
    %2269 = vsyncpa %s2268, 1

</llo_original>
